<compile_context>
chip_gen: v6e
topology: v6e:2x2x1
jax: 0.10.0
libtpu: 0.0.40
codegen_flags: <defaults>
</compile_context>

<pallas_src>
import jax
import jax.numpy as jnp
from jax.experimental import pallas as pl
from jax.experimental.pallas import tpu as pltpu

K = 3  # kernel_size=3 fixed by the module


def _round_up(a, b):
    return (a + b - 1) // b * b


def _make_kernel(Wo, Sp_pad, max_shift):
    def kernel(x0_ref, x1_ref, x2_ref, w_ref, b_ref, o_ref):
        # x{j}_ref: (1, 1, Cin, L)   depth-padded input plane z+j  (j = 0..2)
        # w_ref   : (27, Cout, Cin)  taps ordered (kz, ky, kx)
        # b_ref   : (Cout, 1)
        # o_ref   : (1, 1, Cout, Sp_pad)  lane-dense, 128-aligned output slab
        cout = w_ref.shape[1]
        acc = jnp.zeros((cout, Sp_pad), jnp.float32)
        planes = (x0_ref, x1_ref, x2_ref)
        for j in range(K):              # plane z+j pairs with weight tap kz = K-1-j
            kz = K - 1 - j
            xr = planes[j]
            for ky in range(K):
                for kx in range(K):
                    shift = ky * Wo + kx
                    # statically shifted VMEM slice = (ky,kx) tap, no im2col
                    rhs = xr[0, 0, :, pl.ds(max_shift - shift, Sp_pad)]
                    tap = (kz * K + ky) * K + kx
                    acc = acc + jnp.dot(w_ref[tap], rhs,
                                        preferred_element_type=jnp.float32)
        # Bias + ReLU once per finished slab; full-width unmasked store.
        o_ref[0, 0] = jnp.maximum(acc + b_ref[...], 0.0)

    return kernel


def _plane_spec(cin, L, off):
    return pl.BlockSpec((1, 1, cin, L), lambda n, z: (n, z + off, 0, 0))


def outconv_forward(x, w, b):
    """x: (N, Cin, D, H, W); w: (Cin, Cout, 3, 3, 3) [torch ConvTranspose3d]; b: (Cout,)."""
    N, Cin, D, H, W = x.shape
    Cout = w.shape[1]
    Do, Ho, Wo = D + K - 1, H + K - 1, W + K - 1
    S = Ho * Wo
    Sp_pad = _round_up(S, 128)
    max_shift = (K - 1) * Wo + (K - 1)
    L = _round_up(max_shift + Sp_pad, 128)

    # ---- wrapper-side layout plumbing (no data replication) ----------------
    # Embed each depth plane at output row-stride Wo with a max_shift-lane left
    # zero margin, and zero-pad depth by K-1 planes on each side so the kernel
    # needs no boundary conditions.
    xt = jnp.transpose(x, (0, 2, 1, 3, 4))                      # (N, D, Cin, H, W)
    xt = jnp.pad(xt, ((0, 0), (0, 0), (0, 0), (0, 0), (0, Wo - W)))
    xt = xt.reshape(N, D, Cin, H * Wo)
    x_buf = jnp.pad(
        xt,
        ((0, 0), (K - 1, K - 1), (0, 0),
         (max_shift, L - max_shift - H * Wo)))                  # (N, D+4, Cin, L)

    # Scatter (transposed-conv) form uses the unflipped weight.
    wT = jnp.transpose(w, (2, 3, 4, 1, 0)).reshape(K * K * K, Cout, Cin)
    b2 = b.reshape(Cout, 1)

    kernel = _make_kernel(Wo, Sp_pad, max_shift)

    out = pl.pallas_call(
        kernel,
        out_shape=jax.ShapeDtypeStruct((N, Do, Cout, Sp_pad), jnp.float32),
        grid=(N, Do),
        in_specs=[
            _plane_spec(Cin, L, 0),
            _plane_spec(Cin, L, 1),
            _plane_spec(Cin, L, 2),
            pl.BlockSpec((K * K * K, Cout, Cin), lambda n, z: (0, 0, 0)),
            pl.BlockSpec((Cout, 1), lambda n, z: (0, 0)),
        ],
        out_specs=pl.BlockSpec((1, 1, Cout, Sp_pad), lambda n, z: (n, z, 0, 0)),
        compiler_params=pltpu.CompilerParams(
            dimension_semantics=("parallel", "parallel")),
    )(x_buf, x_buf, x_buf, wT, b2)

    out = out[..., :S].reshape(N, Do, Cout, Ho, Wo)
    return jnp.transpose(out, (0, 2, 1, 3, 4))                  # (N, Cout, Do, Ho, Wo)


def ref_forward(x, w, b):
    """Independent reference: scatter form of ConvTranspose3d + ReLU (pure JAX)."""
    N, Cin, D, H, W = x.shape
    Cout = w.shape[1]
    out = jnp.zeros((N, Cout, D + K - 1, H + K - 1, W + K - 1), jnp.float32)
    for kz in range(K):
        for ky in range(K):
            for kx in range(K):
                contrib = jnp.einsum('nidhw,io->nodhw', x, w[:, :, kz, ky, kx])
                out = out.at[:, :, kz:kz + D, ky:ky + H, kx:kx + W].add(contrib)
    out = out + b[None, :, None, None, None]
    return jnp.maximum(out, 0.0)


if __name__ == "__main__":
    N, Cin, Cout, D, H, W = 2, 4, 2, 8, 8, 8

    key = jax.random.PRNGKey(0)
    kx_, kw_, kb_ = jax.random.split(key, 3)
    x = jax.random.normal(kx_, (N, Cin, D, H, W), dtype=jnp.float32)
    # deterministic synthetic params (shapes per nn.ConvTranspose3d(Cin, Cout, 3))
    w = jax.random.normal(kw_, (Cin, Cout, K, K, K), dtype=jnp.float32) * 0.1
    b = jax.random.normal(kb_, (Cout,), dtype=jnp.float32) * 0.1

    out = outconv_forward(x, w, b)
    out = jax.block_until_ready(out)

    expected = ref_forward(x, w, b)
    assert out.shape == (N, Cout, D + 2, H + 2, W + 2), out.shape
    if bool(jnp.allclose(out, expected, atol=1e-4, rtol=1e-4)):
        print("KERNEL_OK")
    else:
        print("MISMATCH max_abs_err=", float(jnp.max(jnp.abs(out - expected))))
</pallas_src>

<mosaic_0001>
module attributes {stable_mosaic.version = 11 : i64} {
  func.func @kernel(%arg0: i32, %arg1: i32, %arg2: memref<1x1x4x256xf32, #tpu.memory_space<vmem>>, %arg3: memref<1x1x4x256xf32, #tpu.memory_space<vmem>>, %arg4: memref<1x1x4x256xf32, #tpu.memory_space<vmem>>, %arg5: memref<27x2x4xf32, #tpu.memory_space<vmem>>, %arg6: memref<2x1xf32, #tpu.memory_space<vmem>>, %arg7: memref<1x1x2x128xf32, #tpu.memory_space<vmem>>) attributes {dimension_semantics = [#tpu.dimension_semantics<parallel>, #tpu.dimension_semantics<parallel>], iteration_bounds = array<i64: 2, 10>, scalar_prefetch = 0 : i64, scratch_operands = 0 : i64, tpu.core_type = #tpu.core_type<tc>, window_params = [{transform_indices = @transform_0, window_bounds = array<i64: 1, 1, 4, 256>}, {transform_indices = @transform_1, window_bounds = array<i64: 1, 1, 4, 256>}, {transform_indices = @transform_2, window_bounds = array<i64: 1, 1, 4, 256>}, {pipeline_mode = #tpu.pipeline_mode<synchronous>, transform_indices = @transform_3, window_bounds = array<i64: 27, 2, 4>}, {pipeline_mode = #tpu.pipeline_mode<synchronous>, transform_indices = @transform_4, window_bounds = array<i64: 2, 1>}, {transform_indices = @transform_5, window_bounds = array<i64: 1, 1, 2, 128>}]} {
    %cst = arith.constant 0.000000e+00 : f32
    %0 = vector.broadcast %cst : f32 to vector<2x128xf32>
    %c0 = arith.constant 0 : index
    %c0_0 = arith.constant 0 : index
    %c0_1 = arith.constant 0 : index
    %c22 = arith.constant 22 : index
    %1 = vector.load %arg2[%c0, %c0_0, %c0_1, %c22] : memref<1x1x4x256xf32, #tpu.memory_space<vmem>>, vector<1x1x4x128xf32>
    %2 = vector.shape_cast %1 : vector<1x1x4x128xf32> to vector<4x128xf32>
    %c18 = arith.constant 18 : index
    %c0_2 = arith.constant 0 : index
    %c0_3 = arith.constant 0 : index
    %3 = vector.load %arg5[%c18, %c0_2, %c0_3] : memref<27x2x4xf32, #tpu.memory_space<vmem>>, vector<1x2x4xf32>
    %4 = vector.shape_cast %3 : vector<1x2x4xf32> to vector<2x4xf32>
    %cst_4 = arith.constant dense<0.000000e+00> : vector<2x128xf32>
    %5 = tpu.matmul %4, %2, %cst_4 {dimension_numbers = #tpu.dot_dimension_numbers<[1], [0], [0], [1], [0, 0, 1, 1], [], []>} : vector<2x4xf32>, vector<4x128xf32>, vector<2x128xf32> -> vector<2x128xf32>
    %6 = arith.addf %0, %5 : vector<2x128xf32>
    %c0_5 = arith.constant 0 : index
    %c0_6 = arith.constant 0 : index
    %c0_7 = arith.constant 0 : index
    %c21 = arith.constant 21 : index
    %7 = vector.load %arg2[%c0_5, %c0_6, %c0_7, %c21] : memref<1x1x4x256xf32, #tpu.memory_space<vmem>>, vector<1x1x4x128xf32>
    %8 = vector.shape_cast %7 : vector<1x1x4x128xf32> to vector<4x128xf32>
    %c19 = arith.constant 19 : index
    %c0_8 = arith.constant 0 : index
    %c0_9 = arith.constant 0 : index
    %9 = vector.load %arg5[%c19, %c0_8, %c0_9] : memref<27x2x4xf32, #tpu.memory_space<vmem>>, vector<1x2x4xf32>
    %10 = vector.shape_cast %9 : vector<1x2x4xf32> to vector<2x4xf32>
    %cst_10 = arith.constant dense<0.000000e+00> : vector<2x128xf32>
    %11 = tpu.matmul %10, %8, %cst_10 {dimension_numbers = #tpu.dot_dimension_numbers<[1], [0], [0], [1], [0, 0, 1, 1], [], []>} : vector<2x4xf32>, vector<4x128xf32>, vector<2x128xf32> -> vector<2x128xf32>
    %12 = arith.addf %6, %11 : vector<2x128xf32>
    %c0_11 = arith.constant 0 : index
    %c0_12 = arith.constant 0 : index
    %c0_13 = arith.constant 0 : index
    %c20 = arith.constant 20 : index
    %13 = vector.load %arg2[%c0_11, %c0_12, %c0_13, %c20] : memref<1x1x4x256xf32, #tpu.memory_space<vmem>>, vector<1x1x4x128xf32>
    %14 = vector.shape_cast %13 : vector<1x1x4x128xf32> to vector<4x128xf32>
    %c20_14 = arith.constant 20 : index
    %c0_15 = arith.constant 0 : index
    %c0_16 = arith.constant 0 : index
    %15 = vector.load %arg5[%c20_14, %c0_15, %c0_16] : memref<27x2x4xf32, #tpu.memory_space<vmem>>, vector<1x2x4xf32>
    %16 = vector.shape_cast %15 : vector<1x2x4xf32> to vector<2x4xf32>
    %cst_17 = arith.constant dense<0.000000e+00> : vector<2x128xf32>
    %17 = tpu.matmul %16, %14, %cst_17 {dimension_numbers = #tpu.dot_dimension_numbers<[1], [0], [0], [1], [0, 0, 1, 1], [], []>} : vector<2x4xf32>, vector<4x128xf32>, vector<2x128xf32> -> vector<2x128xf32>
    %18 = arith.addf %12, %17 : vector<2x128xf32>
    %c0_18 = arith.constant 0 : index
    %c0_19 = arith.constant 0 : index
    %c0_20 = arith.constant 0 : index
    %c12 = arith.constant 12 : index
    %19 = vector.load %arg2[%c0_18, %c0_19, %c0_20, %c12] : memref<1x1x4x256xf32, #tpu.memory_space<vmem>>, vector<1x1x4x128xf32>
    %20 = vector.shape_cast %19 : vector<1x1x4x128xf32> to vector<4x128xf32>
    %c21_21 = arith.constant 21 : index
    %c0_22 = arith.constant 0 : index
    %c0_23 = arith.constant 0 : index
    %21 = vector.load %arg5[%c21_21, %c0_22, %c0_23] : memref<27x2x4xf32, #tpu.memory_space<vmem>>, vector<1x2x4xf32>
    %22 = vector.shape_cast %21 : vector<1x2x4xf32> to vector<2x4xf32>
    %cst_24 = arith.constant dense<0.000000e+00> : vector<2x128xf32>
    %23 = tpu.matmul %22, %20, %cst_24 {dimension_numbers = #tpu.dot_dimension_numbers<[1], [0], [0], [1], [0, 0, 1, 1], [], []>} : vector<2x4xf32>, vector<4x128xf32>, vector<2x128xf32> -> vector<2x128xf32>
    %24 = arith.addf %18, %23 : vector<2x128xf32>
    %c0_25 = arith.constant 0 : index
    %c0_26 = arith.constant 0 : index
    %c0_27 = arith.constant 0 : index
    %c11 = arith.constant 11 : index
    %25 = vector.load %arg2[%c0_25, %c0_26, %c0_27, %c11] : memref<1x1x4x256xf32, #tpu.memory_space<vmem>>, vector<1x1x4x128xf32>
    %26 = vector.shape_cast %25 : vector<1x1x4x128xf32> to vector<4x128xf32>
    %c22_28 = arith.constant 22 : index
    %c0_29 = arith.constant 0 : index
    %c0_30 = arith.constant 0 : index
    %27 = vector.load %arg5[%c22_28, %c0_29, %c0_30] : memref<27x2x4xf32, #tpu.memory_space<vmem>>, vector<1x2x4xf32>
    %28 = vector.shape_cast %27 : vector<1x2x4xf32> to vector<2x4xf32>
    %cst_31 = arith.constant dense<0.000000e+00> : vector<2x128xf32>
    %29 = tpu.matmul %28, %26, %cst_31 {dimension_numbers = #tpu.dot_dimension_numbers<[1], [0], [0], [1], [0, 0, 1, 1], [], []>} : vector<2x4xf32>, vector<4x128xf32>, vector<2x128xf32> -> vector<2x128xf32>
    %30 = arith.addf %24, %29 : vector<2x128xf32>
    %c0_32 = arith.constant 0 : index
    %c0_33 = arith.constant 0 : index
    %c0_34 = arith.constant 0 : index
    %c10 = arith.constant 10 : index
    %31 = vector.load %arg2[%c0_32, %c0_33, %c0_34, %c10] : memref<1x1x4x256xf32, #tpu.memory_space<vmem>>, vector<1x1x4x128xf32>
    %32 = vector.shape_cast %31 : vector<1x1x4x128xf32> to vector<4x128xf32>
    %c23 = arith.constant 23 : index
    %c0_35 = arith.constant 0 : index
    %c0_36 = arith.constant 0 : index
    %33 = vector.load %arg5[%c23, %c0_35, %c0_36] : memref<27x2x4xf32, #tpu.memory_space<vmem>>, vector<1x2x4xf32>
    %34 = vector.shape_cast %33 : vector<1x2x4xf32> to vector<2x4xf32>
    %cst_37 = arith.constant dense<0.000000e+00> : vector<2x128xf32>
    %35 = tpu.matmul %34, %32, %cst_37 {dimension_numbers = #tpu.dot_dimension_numbers<[1], [0], [0], [1], [0, 0, 1, 1], [], []>} : vector<2x4xf32>, vector<4x128xf32>, vector<2x128xf32> -> vector<2x128xf32>
    %36 = arith.addf %30, %35 : vector<2x128xf32>
    %c0_38 = arith.constant 0 : index
    %c0_39 = arith.constant 0 : index
    %c0_40 = arith.constant 0 : index
    %c2 = arith.constant 2 : index
    %37 = vector.load %arg2[%c0_38, %c0_39, %c0_40, %c2] : memref<1x1x4x256xf32, #tpu.memory_space<vmem>>, vector<1x1x4x128xf32>
    %38 = vector.shape_cast %37 : vector<1x1x4x128xf32> to vector<4x128xf32>
    %c24 = arith.constant 24 : index
    %c0_41 = arith.constant 0 : index
    %c0_42 = arith.constant 0 : index
    %39 = vector.load %arg5[%c24, %c0_41, %c0_42] : memref<27x2x4xf32, #tpu.memory_space<vmem>>, vector<1x2x4xf32>
    %40 = vector.shape_cast %39 : vector<1x2x4xf32> to vector<2x4xf32>
    %cst_43 = arith.constant dense<0.000000e+00> : vector<2x128xf32>
    %41 = tpu.matmul %40, %38, %cst_43 {dimension_numbers = #tpu.dot_dimension_numbers<[1], [0], [0], [1], [0, 0, 1, 1], [], []>} : vector<2x4xf32>, vector<4x128xf32>, vector<2x128xf32> -> vector<2x128xf32>
    %42 = arith.addf %36, %41 : vector<2x128xf32>
    %c0_44 = arith.constant 0 : index
    %c0_45 = arith.constant 0 : index
    %c0_46 = arith.constant 0 : index
    %c1 = arith.constant 1 : index
    %43 = vector.load %arg2[%c0_44, %c0_45, %c0_46, %c1] : memref<1x1x4x256xf32, #tpu.memory_space<vmem>>, vector<1x1x4x128xf32>
    %44 = vector.shape_cast %43 : vector<1x1x4x128xf32> to vector<4x128xf32>
    %c25 = arith.constant 25 : index
    %c0_47 = arith.constant 0 : index
    %c0_48 = arith.constant 0 : index
    %45 = vector.load %arg5[%c25, %c0_47, %c0_48] : memref<27x2x4xf32, #tpu.memory_space<vmem>>, vector<1x2x4xf32>
    %46 = vector.shape_cast %45 : vector<1x2x4xf32> to vector<2x4xf32>
    %cst_49 = arith.constant dense<0.000000e+00> : vector<2x128xf32>
    %47 = tpu.matmul %46, %44, %cst_49 {dimension_numbers = #tpu.dot_dimension_numbers<[1], [0], [0], [1], [0, 0, 1, 1], [], []>} : vector<2x4xf32>, vector<4x128xf32>, vector<2x128xf32> -> vector<2x128xf32>
    %48 = arith.addf %42, %47 : vector<2x128xf32>
    %c0_50 = arith.constant 0 : index
    %c0_51 = arith.constant 0 : index
    %c0_52 = arith.constant 0 : index
    %c0_53 = arith.constant 0 : index
    %49 = vector.load %arg2[%c0_50, %c0_51, %c0_52, %c0_53] : memref<1x1x4x256xf32, #tpu.memory_space<vmem>>, vector<1x1x4x128xf32>
    %50 = vector.shape_cast %49 : vector<1x1x4x128xf32> to vector<4x128xf32>
    %c26 = arith.constant 26 : index
    %c0_54 = arith.constant 0 : index
    %c0_55 = arith.constant 0 : index
    %51 = vector.load %arg5[%c26, %c0_54, %c0_55] : memref<27x2x4xf32, #tpu.memory_space<vmem>>, vector<1x2x4xf32>
    %52 = vector.shape_cast %51 : vector<1x2x4xf32> to vector<2x4xf32>
    %cst_56 = arith.constant dense<0.000000e+00> : vector<2x128xf32>
    %53 = tpu.matmul %52, %50, %cst_56 {dimension_numbers = #tpu.dot_dimension_numbers<[1], [0], [0], [1], [0, 0, 1, 1], [], []>} : vector<2x4xf32>, vector<4x128xf32>, vector<2x128xf32> -> vector<2x128xf32>
    %54 = arith.addf %48, %53 : vector<2x128xf32>
    %c0_57 = arith.constant 0 : index
    %c0_58 = arith.constant 0 : index
    %c0_59 = arith.constant 0 : index
    %c22_60 = arith.constant 22 : index
    %55 = vector.load %arg3[%c0_57, %c0_58, %c0_59, %c22_60] : memref<1x1x4x256xf32, #tpu.memory_space<vmem>>, vector<1x1x4x128xf32>
    %56 = vector.shape_cast %55 : vector<1x1x4x128xf32> to vector<4x128xf32>
    %c9 = arith.constant 9 : index
    %c0_61 = arith.constant 0 : index
    %c0_62 = arith.constant 0 : index
    %57 = vector.load %arg5[%c9, %c0_61, %c0_62] : memref<27x2x4xf32, #tpu.memory_space<vmem>>, vector<1x2x4xf32>
    %58 = vector.shape_cast %57 : vector<1x2x4xf32> to vector<2x4xf32>
    %cst_63 = arith.constant dense<0.000000e+00> : vector<2x128xf32>
    %59 = tpu.matmul %58, %56, %cst_63 {dimension_numbers = #tpu.dot_dimension_numbers<[1], [0], [0], [1], [0, 0, 1, 1], [], []>} : vector<2x4xf32>, vector<4x128xf32>, vector<2x128xf32> -> vector<2x128xf32>
    %60 = arith.addf %54, %59 : vector<2x128xf32>
    %c0_64 = arith.constant 0 : index
    %c0_65 = arith.constant 0 : index
    %c0_66 = arith.constant 0 : index
    %c21_67 = arith.constant 21 : index
    %61 = vector.load %arg3[%c0_64, %c0_65, %c0_66, %c21_67] : memref<1x1x4x256xf32, #tpu.memory_space<vmem>>, vector<1x1x4x128xf32>
    %62 = vector.shape_cast %61 : vector<1x1x4x128xf32> to vector<4x128xf32>
    %c10_68 = arith.constant 10 : index
    %c0_69 = arith.constant 0 : index
    %c0_70 = arith.constant 0 : index
    %63 = vector.load %arg5[%c10_68, %c0_69, %c0_70] : memref<27x2x4xf32, #tpu.memory_space<vmem>>, vector<1x2x4xf32>
    %64 = vector.shape_cast %63 : vector<1x2x4xf32> to vector<2x4xf32>
    %cst_71 = arith.constant dense<0.000000e+00> : vector<2x128xf32>
    %65 = tpu.matmul %64, %62, %cst_71 {dimension_numbers = #tpu.dot_dimension_numbers<[1], [0], [0], [1], [0, 0, 1, 1], [], []>} : vector<2x4xf32>, vector<4x128xf32>, vector<2x128xf32> -> vector<2x128xf32>
    %66 = arith.addf %60, %65 : vector<2x128xf32>
    %c0_72 = arith.constant 0 : index
    %c0_73 = arith.constant 0 : index
    %c0_74 = arith.constant 0 : index
    %c20_75 = arith.constant 20 : index
    %67 = vector.load %arg3[%c0_72, %c0_73, %c0_74, %c20_75] : memref<1x1x4x256xf32, #tpu.memory_space<vmem>>, vector<1x1x4x128xf32>
    %68 = vector.shape_cast %67 : vector<1x1x4x128xf32> to vector<4x128xf32>
    %c11_76 = arith.constant 11 : index
    %c0_77 = arith.constant 0 : index
    %c0_78 = arith.constant 0 : index
    %69 = vector.load %arg5[%c11_76, %c0_77, %c0_78] : memref<27x2x4xf32, #tpu.memory_space<vmem>>, vector<1x2x4xf32>
    %70 = vector.shape_cast %69 : vector<1x2x4xf32> to vector<2x4xf32>
    %cst_79 = arith.constant dense<0.000000e+00> : vector<2x128xf32>
    %71 = tpu.matmul %70, %68, %cst_79 {dimension_numbers = #tpu.dot_dimension_numbers<[1], [0], [0], [1], [0, 0, 1, 1], [], []>} : vector<2x4xf32>, vector<4x128xf32>, vector<2x128xf32> -> vector<2x128xf32>
    %72 = arith.addf %66, %71 : vector<2x128xf32>
    %c0_80 = arith.constant 0 : index
    %c0_81 = arith.constant 0 : index
    %c0_82 = arith.constant 0 : index
    %c12_83 = arith.constant 12 : index
    %73 = vector.load %arg3[%c0_80, %c0_81, %c0_82, %c12_83] : memref<1x1x4x256xf32, #tpu.memory_space<vmem>>, vector<1x1x4x128xf32>
    %74 = vector.shape_cast %73 : vector<1x1x4x128xf32> to vector<4x128xf32>
    %c12_84 = arith.constant 12 : index
    %c0_85 = arith.constant 0 : index
    %c0_86 = arith.constant 0 : index
    %75 = vector.load %arg5[%c12_84, %c0_85, %c0_86] : memref<27x2x4xf32, #tpu.memory_space<vmem>>, vector<1x2x4xf32>
    %76 = vector.shape_cast %75 : vector<1x2x4xf32> to vector<2x4xf32>
    %cst_87 = arith.constant dense<0.000000e+00> : vector<2x128xf32>
    %77 = tpu.matmul %76, %74, %cst_87 {dimension_numbers = #tpu.dot_dimension_numbers<[1], [0], [0], [1], [0, 0, 1, 1], [], []>} : vector<2x4xf32>, vector<4x128xf32>, vector<2x128xf32> -> vector<2x128xf32>
    %78 = arith.addf %72, %77 : vector<2x128xf32>
    %c0_88 = arith.constant 0 : index
    %c0_89 = arith.constant 0 : index
    %c0_90 = arith.constant 0 : index
    %c11_91 = arith.constant 11 : index
    %79 = vector.load %arg3[%c0_88, %c0_89, %c0_90, %c11_91] : memref<1x1x4x256xf32, #tpu.memory_space<vmem>>, vector<1x1x4x128xf32>
    %80 = vector.shape_cast %79 : vector<1x1x4x128xf32> to vector<4x128xf32>
    %c13 = arith.constant 13 : index
    %c0_92 = arith.constant 0 : index
    %c0_93 = arith.constant 0 : index
    %81 = vector.load %arg5[%c13, %c0_92, %c0_93] : memref<27x2x4xf32, #tpu.memory_space<vmem>>, vector<1x2x4xf32>
    %82 = vector.shape_cast %81 : vector<1x2x4xf32> to vector<2x4xf32>
    %cst_94 = arith.constant dense<0.000000e+00> : vector<2x128xf32>
    %83 = tpu.matmul %82, %80, %cst_94 {dimension_numbers = #tpu.dot_dimension_numbers<[1], [0], [0], [1], [0, 0, 1, 1], [], []>} : vector<2x4xf32>, vector<4x128xf32>, vector<2x128xf32> -> vector<2x128xf32>
    %84 = arith.addf %78, %83 : vector<2x128xf32>
    %c0_95 = arith.constant 0 : index
    %c0_96 = arith.constant 0 : index
    %c0_97 = arith.constant 0 : index
    %c10_98 = arith.constant 10 : index
    %85 = vector.load %arg3[%c0_95, %c0_96, %c0_97, %c10_98] : memref<1x1x4x256xf32, #tpu.memory_space<vmem>>, vector<1x1x4x128xf32>
    %86 = vector.shape_cast %85 : vector<1x1x4x128xf32> to vector<4x128xf32>
    %c14 = arith.constant 14 : index
    %c0_99 = arith.constant 0 : index
    %c0_100 = arith.constant 0 : index
    %87 = vector.load %arg5[%c14, %c0_99, %c0_100] : memref<27x2x4xf32, #tpu.memory_space<vmem>>, vector<1x2x4xf32>
    %88 = vector.shape_cast %87 : vector<1x2x4xf32> to vector<2x4xf32>
    %cst_101 = arith.constant dense<0.000000e+00> : vector<2x128xf32>
    %89 = tpu.matmul %88, %86, %cst_101 {dimension_numbers = #tpu.dot_dimension_numbers<[1], [0], [0], [1], [0, 0, 1, 1], [], []>} : vector<2x4xf32>, vector<4x128xf32>, vector<2x128xf32> -> vector<2x128xf32>
    %90 = arith.addf %84, %89 : vector<2x128xf32>
    %c0_102 = arith.constant 0 : index
    %c0_103 = arith.constant 0 : index
    %c0_104 = arith.constant 0 : index
    %c2_105 = arith.constant 2 : index
    %91 = vector.load %arg3[%c0_102, %c0_103, %c0_104, %c2_105] : memref<1x1x4x256xf32, #tpu.memory_space<vmem>>, vector<1x1x4x128xf32>
    %92 = vector.shape_cast %91 : vector<1x1x4x128xf32> to vector<4x128xf32>
    %c15 = arith.constant 15 : index
    %c0_106 = arith.constant 0 : index
    %c0_107 = arith.constant 0 : index
    %93 = vector.load %arg5[%c15, %c0_106, %c0_107] : memref<27x2x4xf32, #tpu.memory_space<vmem>>, vector<1x2x4xf32>
    %94 = vector.shape_cast %93 : vector<1x2x4xf32> to vector<2x4xf32>
    %cst_108 = arith.constant dense<0.000000e+00> : vector<2x128xf32>
    %95 = tpu.matmul %94, %92, %cst_108 {dimension_numbers = #tpu.dot_dimension_numbers<[1], [0], [0], [1], [0, 0, 1, 1], [], []>} : vector<2x4xf32>, vector<4x128xf32>, vector<2x128xf32> -> vector<2x128xf32>
    %96 = arith.addf %90, %95 : vector<2x128xf32>
    %c0_109 = arith.constant 0 : index
    %c0_110 = arith.constant 0 : index
    %c0_111 = arith.constant 0 : index
    %c1_112 = arith.constant 1 : index
    %97 = vector.load %arg3[%c0_109, %c0_110, %c0_111, %c1_112] : memref<1x1x4x256xf32, #tpu.memory_space<vmem>>, vector<1x1x4x128xf32>
    %98 = vector.shape_cast %97 : vector<1x1x4x128xf32> to vector<4x128xf32>
    %c16 = arith.constant 16 : index
    %c0_113 = arith.constant 0 : index
    %c0_114 = arith.constant 0 : index
    %99 = vector.load %arg5[%c16, %c0_113, %c0_114] : memref<27x2x4xf32, #tpu.memory_space<vmem>>, vector<1x2x4xf32>
    %100 = vector.shape_cast %99 : vector<1x2x4xf32> to vector<2x4xf32>
    %cst_115 = arith.constant dense<0.000000e+00> : vector<2x128xf32>
    %101 = tpu.matmul %100, %98, %cst_115 {dimension_numbers = #tpu.dot_dimension_numbers<[1], [0], [0], [1], [0, 0, 1, 1], [], []>} : vector<2x4xf32>, vector<4x128xf32>, vector<2x128xf32> -> vector<2x128xf32>
    %102 = arith.addf %96, %101 : vector<2x128xf32>
    %c0_116 = arith.constant 0 : index
    %c0_117 = arith.constant 0 : index
    %c0_118 = arith.constant 0 : index
    %c0_119 = arith.constant 0 : index
    %103 = vector.load %arg3[%c0_116, %c0_117, %c0_118, %c0_119] : memref<1x1x4x256xf32, #tpu.memory_space<vmem>>, vector<1x1x4x128xf32>
    %104 = vector.shape_cast %103 : vector<1x1x4x128xf32> to vector<4x128xf32>
    %c17 = arith.constant 17 : index
    %c0_120 = arith.constant 0 : index
    %c0_121 = arith.constant 0 : index
    %105 = vector.load %arg5[%c17, %c0_120, %c0_121] : memref<27x2x4xf32, #tpu.memory_space<vmem>>, vector<1x2x4xf32>
    %106 = vector.shape_cast %105 : vector<1x2x4xf32> to vector<2x4xf32>
    %cst_122 = arith.constant dense<0.000000e+00> : vector<2x128xf32>
    %107 = tpu.matmul %106, %104, %cst_122 {dimension_numbers = #tpu.dot_dimension_numbers<[1], [0], [0], [1], [0, 0, 1, 1], [], []>} : vector<2x4xf32>, vector<4x128xf32>, vector<2x128xf32> -> vector<2x128xf32>
    %108 = arith.addf %102, %107 : vector<2x128xf32>
    %c0_123 = arith.constant 0 : index
    %c0_124 = arith.constant 0 : index
    %c0_125 = arith.constant 0 : index
    %c22_126 = arith.constant 22 : index
    %109 = vector.load %arg4[%c0_123, %c0_124, %c0_125, %c22_126] : memref<1x1x4x256xf32, #tpu.memory_space<vmem>>, vector<1x1x4x128xf32>
    %110 = vector.shape_cast %109 : vector<1x1x4x128xf32> to vector<4x128xf32>
    %c0_127 = arith.constant 0 : index
    %c0_128 = arith.constant 0 : index
    %c0_129 = arith.constant 0 : index
    %111 = vector.load %arg5[%c0_127, %c0_128, %c0_129] : memref<27x2x4xf32, #tpu.memory_space<vmem>>, vector<1x2x4xf32>
    %112 = vector.shape_cast %111 : vector<1x2x4xf32> to vector<2x4xf32>
    %cst_130 = arith.constant dense<0.000000e+00> : vector<2x128xf32>
    %113 = tpu.matmul %112, %110, %cst_130 {dimension_numbers = #tpu.dot_dimension_numbers<[1], [0], [0], [1], [0, 0, 1, 1], [], []>} : vector<2x4xf32>, vector<4x128xf32>, vector<2x128xf32> -> vector<2x128xf32>
    %114 = arith.addf %108, %113 : vector<2x128xf32>
    %c0_131 = arith.constant 0 : index
    %c0_132 = arith.constant 0 : index
    %c0_133 = arith.constant 0 : index
    %c21_134 = arith.constant 21 : index
    %115 = vector.load %arg4[%c0_131, %c0_132, %c0_133, %c21_134] : memref<1x1x4x256xf32, #tpu.memory_space<vmem>>, vector<1x1x4x128xf32>
    %116 = vector.shape_cast %115 : vector<1x1x4x128xf32> to vector<4x128xf32>
    %c1_135 = arith.constant 1 : index
    %c0_136 = arith.constant 0 : index
    %c0_137 = arith.constant 0 : index
    %117 = vector.load %arg5[%c1_135, %c0_136, %c0_137] : memref<27x2x4xf32, #tpu.memory_space<vmem>>, vector<1x2x4xf32>
    %118 = vector.shape_cast %117 : vector<1x2x4xf32> to vector<2x4xf32>
    %cst_138 = arith.constant dense<0.000000e+00> : vector<2x128xf32>
    %119 = tpu.matmul %118, %116, %cst_138 {dimension_numbers = #tpu.dot_dimension_numbers<[1], [0], [0], [1], [0, 0, 1, 1], [], []>} : vector<2x4xf32>, vector<4x128xf32>, vector<2x128xf32> -> vector<2x128xf32>
    %120 = arith.addf %114, %119 : vector<2x128xf32>
    %c0_139 = arith.constant 0 : index
    %c0_140 = arith.constant 0 : index
    %c0_141 = arith.constant 0 : index
    %c20_142 = arith.constant 20 : index
    %121 = vector.load %arg4[%c0_139, %c0_140, %c0_141, %c20_142] : memref<1x1x4x256xf32, #tpu.memory_space<vmem>>, vector<1x1x4x128xf32>
    %122 = vector.shape_cast %121 : vector<1x1x4x128xf32> to vector<4x128xf32>
    %c2_143 = arith.constant 2 : index
    %c0_144 = arith.constant 0 : index
    %c0_145 = arith.constant 0 : index
    %123 = vector.load %arg5[%c2_143, %c0_144, %c0_145] : memref<27x2x4xf32, #tpu.memory_space<vmem>>, vector<1x2x4xf32>
    %124 = vector.shape_cast %123 : vector<1x2x4xf32> to vector<2x4xf32>
    %cst_146 = arith.constant dense<0.000000e+00> : vector<2x128xf32>
    %125 = tpu.matmul %124, %122, %cst_146 {dimension_numbers = #tpu.dot_dimension_numbers<[1], [0], [0], [1], [0, 0, 1, 1], [], []>} : vector<2x4xf32>, vector<4x128xf32>, vector<2x128xf32> -> vector<2x128xf32>
    %126 = arith.addf %120, %125 : vector<2x128xf32>
    %c0_147 = arith.constant 0 : index
    %c0_148 = arith.constant 0 : index
    %c0_149 = arith.constant 0 : index
    %c12_150 = arith.constant 12 : index
    %127 = vector.load %arg4[%c0_147, %c0_148, %c0_149, %c12_150] : memref<1x1x4x256xf32, #tpu.memory_space<vmem>>, vector<1x1x4x128xf32>
    %128 = vector.shape_cast %127 : vector<1x1x4x128xf32> to vector<4x128xf32>
    %c3 = arith.constant 3 : index
    %c0_151 = arith.constant 0 : index
    %c0_152 = arith.constant 0 : index
    %129 = vector.load %arg5[%c3, %c0_151, %c0_152] : memref<27x2x4xf32, #tpu.memory_space<vmem>>, vector<1x2x4xf32>
    %130 = vector.shape_cast %129 : vector<1x2x4xf32> to vector<2x4xf32>
    %cst_153 = arith.constant dense<0.000000e+00> : vector<2x128xf32>
    %131 = tpu.matmul %130, %128, %cst_153 {dimension_numbers = #tpu.dot_dimension_numbers<[1], [0], [0], [1], [0, 0, 1, 1], [], []>} : vector<2x4xf32>, vector<4x128xf32>, vector<2x128xf32> -> vector<2x128xf32>
    %132 = arith.addf %126, %131 : vector<2x128xf32>
    %c0_154 = arith.constant 0 : index
    %c0_155 = arith.constant 0 : index
    %c0_156 = arith.constant 0 : index
    %c11_157 = arith.constant 11 : index
    %133 = vector.load %arg4[%c0_154, %c0_155, %c0_156, %c11_157] : memref<1x1x4x256xf32, #tpu.memory_space<vmem>>, vector<1x1x4x128xf32>
    %134 = vector.shape_cast %133 : vector<1x1x4x128xf32> to vector<4x128xf32>
    %c4 = arith.constant 4 : index
    %c0_158 = arith.constant 0 : index
    %c0_159 = arith.constant 0 : index
    %135 = vector.load %arg5[%c4, %c0_158, %c0_159] : memref<27x2x4xf32, #tpu.memory_space<vmem>>, vector<1x2x4xf32>
    %136 = vector.shape_cast %135 : vector<1x2x4xf32> to vector<2x4xf32>
    %cst_160 = arith.constant dense<0.000000e+00> : vector<2x128xf32>
    %137 = tpu.matmul %136, %134, %cst_160 {dimension_numbers = #tpu.dot_dimension_numbers<[1], [0], [0], [1], [0, 0, 1, 1], [], []>} : vector<2x4xf32>, vector<4x128xf32>, vector<2x128xf32> -> vector<2x128xf32>
    %138 = arith.addf %132, %137 : vector<2x128xf32>
    %c0_161 = arith.constant 0 : index
    %c0_162 = arith.constant 0 : index
    %c0_163 = arith.constant 0 : index
    %c10_164 = arith.constant 10 : index
    %139 = vector.load %arg4[%c0_161, %c0_162, %c0_163, %c10_164] : memref<1x1x4x256xf32, #tpu.memory_space<vmem>>, vector<1x1x4x128xf32>
    %140 = vector.shape_cast %139 : vector<1x1x4x128xf32> to vector<4x128xf32>
    %c5 = arith.constant 5 : index
    %c0_165 = arith.constant 0 : index
    %c0_166 = arith.constant 0 : index
    %141 = vector.load %arg5[%c5, %c0_165, %c0_166] : memref<27x2x4xf32, #tpu.memory_space<vmem>>, vector<1x2x4xf32>
    %142 = vector.shape_cast %141 : vector<1x2x4xf32> to vector<2x4xf32>
    %cst_167 = arith.constant dense<0.000000e+00> : vector<2x128xf32>
    %143 = tpu.matmul %142, %140, %cst_167 {dimension_numbers = #tpu.dot_dimension_numbers<[1], [0], [0], [1], [0, 0, 1, 1], [], []>} : vector<2x4xf32>, vector<4x128xf32>, vector<2x128xf32> -> vector<2x128xf32>
    %144 = arith.addf %138, %143 : vector<2x128xf32>
    %c0_168 = arith.constant 0 : index
    %c0_169 = arith.constant 0 : index
    %c0_170 = arith.constant 0 : index
    %c2_171 = arith.constant 2 : index
    %145 = vector.load %arg4[%c0_168, %c0_169, %c0_170, %c2_171] : memref<1x1x4x256xf32, #tpu.memory_space<vmem>>, vector<1x1x4x128xf32>
    %146 = vector.shape_cast %145 : vector<1x1x4x128xf32> to vector<4x128xf32>
    %c6 = arith.constant 6 : index
    %c0_172 = arith.constant 0 : index
    %c0_173 = arith.constant 0 : index
    %147 = vector.load %arg5[%c6, %c0_172, %c0_173] : memref<27x2x4xf32, #tpu.memory_space<vmem>>, vector<1x2x4xf32>
    %148 = vector.shape_cast %147 : vector<1x2x4xf32> to vector<2x4xf32>
    %cst_174 = arith.constant dense<0.000000e+00> : vector<2x128xf32>
    %149 = tpu.matmul %148, %146, %cst_174 {dimension_numbers = #tpu.dot_dimension_numbers<[1], [0], [0], [1], [0, 0, 1, 1], [], []>} : vector<2x4xf32>, vector<4x128xf32>, vector<2x128xf32> -> vector<2x128xf32>
    %150 = arith.addf %144, %149 : vector<2x128xf32>
    %c0_175 = arith.constant 0 : index
    %c0_176 = arith.constant 0 : index
    %c0_177 = arith.constant 0 : index
    %c1_178 = arith.constant 1 : index
    %151 = vector.load %arg4[%c0_175, %c0_176, %c0_177, %c1_178] : memref<1x1x4x256xf32, #tpu.memory_space<vmem>>, vector<1x1x4x128xf32>
    %152 = vector.shape_cast %151 : vector<1x1x4x128xf32> to vector<4x128xf32>
    %c7 = arith.constant 7 : index
    %c0_179 = arith.constant 0 : index
    %c0_180 = arith.constant 0 : index
    %153 = vector.load %arg5[%c7, %c0_179, %c0_180] : memref<27x2x4xf32, #tpu.memory_space<vmem>>, vector<1x2x4xf32>
    %154 = vector.shape_cast %153 : vector<1x2x4xf32> to vector<2x4xf32>
    %cst_181 = arith.constant dense<0.000000e+00> : vector<2x128xf32>
    %155 = tpu.matmul %154, %152, %cst_181 {dimension_numbers = #tpu.dot_dimension_numbers<[1], [0], [0], [1], [0, 0, 1, 1], [], []>} : vector<2x4xf32>, vector<4x128xf32>, vector<2x128xf32> -> vector<2x128xf32>
    %156 = arith.addf %150, %155 : vector<2x128xf32>
    %c0_182 = arith.constant 0 : index
    %c0_183 = arith.constant 0 : index
    %c0_184 = arith.constant 0 : index
    %c0_185 = arith.constant 0 : index
    %157 = vector.load %arg4[%c0_182, %c0_183, %c0_184, %c0_185] : memref<1x1x4x256xf32, #tpu.memory_space<vmem>>, vector<1x1x4x128xf32>
    %158 = vector.shape_cast %157 : vector<1x1x4x128xf32> to vector<4x128xf32>
    %c8 = arith.constant 8 : index
    %c0_186 = arith.constant 0 : index
    %c0_187 = arith.constant 0 : index
    %159 = vector.load %arg5[%c8, %c0_186, %c0_187] : memref<27x2x4xf32, #tpu.memory_space<vmem>>, vector<1x2x4xf32>
    %160 = vector.shape_cast %159 : vector<1x2x4xf32> to vector<2x4xf32>
    %cst_188 = arith.constant dense<0.000000e+00> : vector<2x128xf32>
    %161 = tpu.matmul %160, %158, %cst_188 {dimension_numbers = #tpu.dot_dimension_numbers<[1], [0], [0], [1], [0, 0, 1, 1], [], []>} : vector<2x4xf32>, vector<4x128xf32>, vector<2x128xf32> -> vector<2x128xf32>
    %162 = arith.addf %156, %161 : vector<2x128xf32>
    %c0_189 = arith.constant 0 : index
    %c0_190 = arith.constant 0 : index
    %163 = vector.load %arg6[%c0_189, %c0_190] : memref<2x1xf32, #tpu.memory_space<vmem>>, vector<2x1xf32>
    %164 = vector.broadcast %163 : vector<2x1xf32> to vector<2x128xf32>
    %165 = arith.addf %162, %164 : vector<2x128xf32>
    %cst_191 = arith.constant 0.000000e+00 : f32
    %166 = vector.broadcast %cst_191 : f32 to vector<2x128xf32>
    %167 = arith.maximumf %165, %166 : vector<2x128xf32>
    %c0_192 = arith.constant 0 : index
    %c0_193 = arith.constant 0 : index
    %c0_194 = arith.constant 0 : index
    %c0_195 = arith.constant 0 : index
    %168 = vector.load %arg7[%c0_192, %c0_193, %c0_194, %c0_195] : memref<1x1x2x128xf32, #tpu.memory_space<vmem>>, vector<1x1x2x128xf32>
    %169 = vector.shape_cast %168 : vector<1x1x2x128xf32> to vector<2x128xf32>
    %170 = vector.shape_cast %167 : vector<2x128xf32> to vector<1x1x2x128xf32>
    tpu.vector_store %arg7[%c0_192, %c0_193, %c0_194, %c0_195], %170 {strides = array<i32>} : memref<1x1x2x128xf32, #tpu.memory_space<vmem>>, vector<1x1x2x128xf32>,
    return
  }
  func.func @transform_0(%arg0: i32, %arg1: i32) -> (i32, i32, i32, i32) {
    %c0_i32 = arith.constant 0 : i32
    %0 = arith.addi %arg1, %c0_i32 : i32
    %c0_i32_0 = arith.constant 0 : i32
    %c0_i32_1 = arith.constant 0 : i32
    %c0_i32_2 = arith.constant 0 : i32
    return %arg0, %0, %c0_i32_0, %c0_i32_1 : i32, i32, i32, i32
  }
  func.func @transform_1(%arg0: i32, %arg1: i32) -> (i32, i32, i32, i32) {
    %c1_i32 = arith.constant 1 : i32
    %0 = arith.addi %arg1, %c1_i32 : i32
    %c0_i32 = arith.constant 0 : i32
    %c0_i32_0 = arith.constant 0 : i32
    %c0_i32_1 = arith.constant 0 : i32
    return %arg0, %0, %c0_i32, %c0_i32_0 : i32, i32, i32, i32
  }
  func.func @transform_2(%arg0: i32, %arg1: i32) -> (i32, i32, i32, i32) {
    %c2_i32 = arith.constant 2 : i32
    %0 = arith.addi %arg1, %c2_i32 : i32
    %c0_i32 = arith.constant 0 : i32
    %c0_i32_0 = arith.constant 0 : i32
    %c0_i32_1 = arith.constant 0 : i32
    return %arg0, %0, %c0_i32, %c0_i32_0 : i32, i32, i32, i32
  }
  func.func @transform_3(%arg0: i32, %arg1: i32) -> (i32, i32, i32) {
    %c0_i32 = arith.constant 0 : i32
    %c0_i32_0 = arith.constant 0 : i32
    %c0_i32_1 = arith.constant 0 : i32
    %c0_i32_2 = arith.constant 0 : i32
    return %c0_i32, %c0_i32_0, %c0_i32_1 : i32, i32, i32
  }
  func.func @transform_4(%arg0: i32, %arg1: i32) -> (i32, i32) {
    %c0_i32 = arith.constant 0 : i32
    %c0_i32_0 = arith.constant 0 : i32
    %c0_i32_1 = arith.constant 0 : i32
    return %c0_i32, %c0_i32_0 : i32, i32
  }
  func.func @transform_5(%arg0: i32, %arg1: i32) -> (i32, i32, i32, i32) {
    %c0_i32 = arith.constant 0 : i32
    %c0_i32_0 = arith.constant 0 : i32
    %c0_i32_1 = arith.constant 0 : i32
    return %arg0, %arg1, %c0_i32, %c0_i32_0 : i32, i32, i32, i32
  }
}

</mosaic_0001>

<llo_original>
// kernel: tpu_custom_call.1
$region0: #{tpu_custom_call.1}
  #allocation0 [shape = 'u32[]', space=smem, size = 0x4, offset = 0x4, fixed_abs, tag = 'smem constant byte address 0x4 - core index']
  #allocation1 [shape = 'u32[144,128]{1,0:T(1,128)}', space=vmem, size = 0x12000, scoped, tag = 'internal scratch']
  %s0 = inlined_call_operand.hbm [shape: f32[2,12,4,256], index: 0, kind: input, shape index: {}]
  %s1 = inlined_call_operand.hbm [shape: f32[2,12,4,256], index: 1, kind: input, shape index: {}]
  %s2 = inlined_call_operand.hbm [shape: f32[2,12,4,256], index: 2, kind: input, shape index: {}]
  %s3 = inlined_call_operand.vmem [shape: f32[27,2,4], index: 3, kind: input, shape index: {}]
  %s4 = inlined_call_operand.vmem [shape: f32[2,1], index: 4, kind: input, shape index: {}]
  %s5 = inlined_call_operand.hbm [shape: f32[2,10,2,128], index: 5, kind: output, shape index: {}]
  %s6 = sld [smem:[#allocation0]]
  $region65: #{tpu_custom_call.1} parent=0
    _
  %s8 = ssub.s32 1, %s6
  %s9 = scalar_select 0, %s8, %s6
  $region1: #{tpu_custom_call.1} parent=0
    #allocation2 [shape = 'u8[8192]{0}', space=vmem, size = 0x2000, scoped, tag = 'input window, operand 0']
    #allocation3 [shape = 's32[2]{0}', space=sflag, size = 0x8, scoped, tag = 'scoped memory for tpu_custom_call.1']
    #allocation4 [shape = 's32[2]{0}', space=sflag, size = 0x8, scoped, tag = 'scoped memory for tpu_custom_call.1']
    #allocation5 [shape = 'u8[8192]{0}', space=vmem, size = 0x2000, scoped, tag = 'input window, operand 1']
    #allocation6 [shape = 's32[2]{0}', space=sflag, size = 0x8, scoped, tag = 'scoped memory for tpu_custom_call.1']
    #allocation7 [shape = 'u8[8192]{0}', space=vmem, size = 0x2000, scoped, tag = 'input window, operand 2']
    #allocation8 [shape = 'u8[2048]{0}', space=vmem, size = 0x800, scoped, tag = 'output window, operand 0']
    %10 = vsyncpa [#allocation3], 0
    %s11 = scalar_lea.sflag [#allocation3], 1
    %12 = vsyncpa %s11, 0
    %13 = vsyncpa [#allocation6], 0
    %s14 = scalar_lea.sflag [#allocation6], 1
    %15 = vsyncpa %s14, 0
    %16 = vsyncpa [#allocation4], 0
    %s17 = scalar_lea.sflag [#allocation4], 1
    %18 = vsyncpa %s17, 0
    loop: start=0, step=1, limit=22
    $region2: #{tpu_custom_call.1} parent=1 // loop_pre_header
      _
    $region3: #{tpu_custom_call.1} parent=1 // loop_header
      %s20 = sphi 0, %s24
      %p21 = scmp.ge.s32.totalorder %s20, 22
      %s27 = sphi 0, %s39
      %s28 = sphi 0, %s35
      %s29 = sphi 0, %s27
      %s30 = sphi 0, %s28
      %s31 = sphi 0, %s29
      %s32 = sphi 0, %s30
      %s44 = sphi 0, %s46
      %s47 = sphi 0, %s44
      %s48 = sphi 0, %s47
      %s64 = sphi 0, %s48
      %s74 = sphi 0, %s76
      %s77 = sphi 0, %s74
      %s78 = sphi 0, %s77
      %s94 = sphi 0, %s78
      %s104 = sphi 0, %s106
      %s107 = sphi 0, %s104
      %s108 = sphi 0, %s107
      %s124 = sphi 0, %s108
      %s128 = sphi 0, %s128
      %s130 = sphi 0, %s128
      %s131 = sphi 0, %s130
      %s145 = sphi 0, %s131
      %s149 = sphi 0, %s149
      %s151 = sphi 0, %s149
      %s152 = sphi 0, %s151
      %s166 = sphi 0, %s152
      %s174 = sphi 0, %s176
      %s177 = sphi 0, %s174
      %s178 = sphi 0, %s177
      %s194 = sphi 0, %s178
    $region4: #{tpu_custom_call.1} parent=1 // loop_header_branch
      %23 = sbr.rel (%p21) target = $region8
    $region5: #{tpu_custom_call.1} parent=1 // loop_body
      %s25 = ssub.s32 %s20, 1
      %s26 = ssub.s32 %s20, 2
      %s33 = sadd.s32 1, %s28
      %p34 = scmp.ge.s32.totalorder %s33, 10
      %s35 = scalar_select %p34, 0, %s33
      %s36 = sadd.s32 1, %s27
      %s37 = scalar_select %p34, %s36, %s27
      %p38 = scmp.ge.s32.totalorder %s37, 2
      %s39 = scalar_select %p38, 0, %s37
      %s40 = ssub.s32 %s27, %s39
      %s41 = ssub.s32 %s28, %s35
      %s42 = sor.u32 %s40, %s41
      %p43 = scmp.eq.s32.totalorder %s42, 0
      %s45 = sadd.s32 %s44, 1
      %s46 = scalar_select %p43, %s44, %s45
      %p49 = pneg %p43
      %p50 = scmp.eq.s32.totalorder %s20, 19
      %p51 = por %p49, %p50
      %p52 = scmp.ne.s32.totalorder %s44, %s47
      %p53 = scmp.eq.s32.totalorder %s20, 0
      %p54 = por %p52, %p53
      %p55 = scmp.ne.s32.totalorder %s44, %s47
      %p56 = scmp.eq.s32.totalorder %s25, 19
      %p57 = por %p55, %p56
      %p58 = scmp.ne.s32.totalorder %s47, %s48
      %p59 = scmp.eq.s32.totalorder %s25, 0
      %p60 = por %p58, %p59
      %p61 = scmp.ne.s32.totalorder %s47, %s48
      %p62 = scmp.eq.s32.totalorder %s26, 19
      %p63 = por %p61, %p62
      %p65 = scmp.ne.s32.totalorder %s48, %s64
      %p66 = scmp.eq.s32.totalorder %s26, 0
      %p67 = por %p65, %p66
      %s68 = sadd.s32 %s28, 1
      %s69 = sadd.s32 %s35, 1
      %s70 = ssub.s32 %s27, %s39
      %s71 = ssub.s32 %s68, %s69
      %s72 = sor.u32 %s70, %s71
      %p73 = scmp.eq.s32.totalorder %s72, 0
      %s75 = sadd.s32 %s74, 1
      %s76 = scalar_select %p73, %s74, %s75
      %p79 = pneg %p73
      %p80 = scmp.eq.s32.totalorder %s20, 19
      %p81 = por %p79, %p80
      %p82 = scmp.ne.s32.totalorder %s74, %s77
      %p83 = scmp.eq.s32.totalorder %s20, 0
      %p84 = por %p82, %p83
      %p85 = scmp.ne.s32.totalorder %s74, %s77
      %p86 = scmp.eq.s32.totalorder %s25, 19
      %p87 = por %p85, %p86
      %p88 = scmp.ne.s32.totalorder %s77, %s78
      %p89 = scmp.eq.s32.totalorder %s25, 0
      %p90 = por %p88, %p89
      %p91 = scmp.ne.s32.totalorder %s77, %s78
      %p92 = scmp.eq.s32.totalorder %s26, 19
      %p93 = por %p91, %p92
      %p95 = scmp.ne.s32.totalorder %s78, %s94
      %p96 = scmp.eq.s32.totalorder %s26, 0
      %p97 = por %p95, %p96
      %s98 = sadd.s32 %s28, 2
      %s99 = sadd.s32 %s35, 2
      %s100 = ssub.s32 %s27, %s39
      %s101 = ssub.s32 %s98, %s99
      %s102 = sor.u32 %s100, %s101
      %p103 = scmp.eq.s32.totalorder %s102, 0
      %s105 = sadd.s32 %s104, 1
      %s106 = scalar_select %p103, %s104, %s105
      %p109 = pneg %p103
      %p110 = scmp.eq.s32.totalorder %s20, 19
      %p111 = por %p109, %p110
      %p112 = scmp.ne.s32.totalorder %s104, %s107
      %p113 = scmp.eq.s32.totalorder %s20, 0
      %p114 = por %p112, %p113
      %p115 = scmp.ne.s32.totalorder %s104, %s107
      %p116 = scmp.eq.s32.totalorder %s25, 19
      %p117 = por %p115, %p116
      %p118 = scmp.ne.s32.totalorder %s107, %s108
      %p119 = scmp.eq.s32.totalorder %s25, 0
      %p120 = por %p118, %p119
      %p121 = scmp.ne.s32.totalorder %s107, %s108
      %p122 = scmp.eq.s32.totalorder %s26, 19
      %p123 = por %p121, %p122
      %p125 = scmp.ne.s32.totalorder %s108, %s124
      %p126 = scmp.eq.s32.totalorder %s26, 0
      %p127 = por %p125, %p126
      %s129 = sadd.s32 %s128, 1
      %p132 = scmp.eq.s32.totalorder %s20, 19
      %p133 = scmp.ne.s32.totalorder %s128, %s130
      %p134 = scmp.eq.s32.totalorder %s20, 0
      %p135 = por %p133, %p134
      %p136 = scmp.ne.s32.totalorder %s128, %s130
      %p137 = scmp.eq.s32.totalorder %s25, 19
      %p138 = por %p136, %p137
      %p139 = scmp.ne.s32.totalorder %s130, %s131
      %p140 = scmp.eq.s32.totalorder %s25, 0
      %p141 = por %p139, %p140
      %p142 = scmp.ne.s32.totalorder %s130, %s131
      %p143 = scmp.eq.s32.totalorder %s26, 19
      %p144 = por %p142, %p143
      %p146 = scmp.ne.s32.totalorder %s131, %s145
      %p147 = scmp.eq.s32.totalorder %s26, 0
      %p148 = por %p146, %p147
      %s150 = sadd.s32 %s149, 1
      %p153 = scmp.eq.s32.totalorder %s20, 19
      %p154 = scmp.ne.s32.totalorder %s149, %s151
      %p155 = scmp.eq.s32.totalorder %s20, 0
      %p156 = por %p154, %p155
      %p157 = scmp.ne.s32.totalorder %s149, %s151
      %p158 = scmp.eq.s32.totalorder %s25, 19
      %p159 = por %p157, %p158
      %p160 = scmp.ne.s32.totalorder %s151, %s152
      %p161 = scmp.eq.s32.totalorder %s25, 0
      %p162 = por %p160, %p161
      %p163 = scmp.ne.s32.totalorder %s151, %s152
      %p164 = scmp.eq.s32.totalorder %s26, 19
      %p165 = por %p163, %p164
      %p167 = scmp.ne.s32.totalorder %s152, %s166
      %p168 = scmp.eq.s32.totalorder %s26, 0
      %p169 = por %p167, %p168
      %s170 = ssub.s32 %s27, %s39
      %s171 = ssub.s32 %s28, %s35
      %s172 = sor.u32 %s170, %s171
      %p173 = scmp.eq.s32.totalorder %s172, 0
      %s175 = sadd.s32 %s174, 1
      %s176 = scalar_select %p173, %s174, %s175
      %p179 = pneg %p173
      %p180 = scmp.eq.s32.totalorder %s20, 19
      %p181 = por %p179, %p180
      %p182 = scmp.ne.s32.totalorder %s174, %s177
      %p183 = scmp.eq.s32.totalorder %s20, 0
      %p184 = por %p182, %p183
      %p185 = scmp.ne.s32.totalorder %s174, %s177
      %p186 = scmp.eq.s32.totalorder %s25, 19
      %p187 = por %p185, %p186
      %p188 = scmp.ne.s32.totalorder %s177, %s178
      %p189 = scmp.eq.s32.totalorder %s25, 0
      %p190 = por %p188, %p189
      %p191 = scmp.ne.s32.totalorder %s177, %s178
      %p192 = scmp.eq.s32.totalorder %s26, 19
      %p193 = por %p191, %p192
      %p195 = scmp.ne.s32.totalorder %s178, %s194
      %p196 = scmp.eq.s32.totalorder %s26, 0
      %p197 = por %p195, %p196
      %p198 = scmp.le.s32.totalorder 1, %s20
      %p199 = scmp.lt.s32.totalorder %s20, 21
      %p200 = pnand %p198, %p199
      %p201 = pneg %p200
      // Predicated region
      $region9: #{tpu_custom_call.1} parent=5 // pred_check
        _
      $region10: #{tpu_custom_call.1} parent=5 // pred_check_branch
        %203 = sbr.rel (%p200) target = $region12
      $region11: #{tpu_custom_call.1} parent=5 // pred_region
        %s204 = ssub.s32 %s20, 1
        // Predicated region
        $region13: #{tpu_custom_call.1} parent=11 // pred_check
          %p205 = pneg %p141
        $region14: #{tpu_custom_call.1} parent=11 // pred_check_branch
          %207 = sbr.rel (%p205) target = $region16
        $region15: #{tpu_custom_call.1} parent=11 // pred_region
          _
        $region16: #{tpu_custom_call.1} parent=11 // pred_fallthru
          _
        // Predicated region
        $region17: #{tpu_custom_call.1} parent=11 // pred_check
          %p208 = pneg %p162
        $region18: #{tpu_custom_call.1} parent=11 // pred_check_branch
          %210 = sbr.rel (%p208) target = $region20
        $region19: #{tpu_custom_call.1} parent=11 // pred_region
          _
        $region20: #{tpu_custom_call.1} parent=11 // pred_fallthru
          _
      $region12: #{tpu_custom_call.1} parent=5 // pred_fallthru
        _
      %p211 = scmp.lt.s32.totalorder %s20, 20
      // Predicated region
      $region21: #{tpu_custom_call.1} parent=5 // pred_check
        %p212 = pneg %p211
      $region22: #{tpu_custom_call.1} parent=5 // pred_check_branch
        %214 = sbr.rel (%p212) target = $region24
      $region23: #{tpu_custom_call.1} parent=5 // pred_region
        // Predicated region
        $region25: #{tpu_custom_call.1} parent=23 // pred_check
          %p215 = pneg %p54
        $region26: #{tpu_custom_call.1} parent=23 // pred_check_branch
          %217 = sbr.rel (%p215) target = $region28
        $region27: #{tpu_custom_call.1} parent=23 // pred_region
          %s218 = sand.u32 %s44, 1
          %s219 = scalar_lea.sflag [#allocation3], %s218
          %s220 = sand.u32 %s44, 1
          %s221 = smul.addr %s220, 8
          %s222 = scalar_lea.vmem [#allocation2], %s221
          %s224 = ssub.s32 128, 128
          %225 = vsyncadd %s219, %s224
          %s226 = smul.addr %s28, 2
          %s227 = smul.addr %s27, 24
          %s228 = sadd.s32 %s226, %s227
          %s229 = smul.addr %s228, 64
          %s230 = scalar_lea.hbm %s0, %s229
          %s232 = sshll.u32 %s222, 4
          %s233 = int_to_ptr.vmem [resolvable:$true] %s232
          %235 = dma.hbm_to_vmem [thread:$0]  %s230, 128, %s233, %s219
        $region28: #{tpu_custom_call.1} parent=23 // pred_fallthru
          _
        // Predicated region
        $region29: #{tpu_custom_call.1} parent=23 // pred_check
          %p236 = pneg %p84
        $region30: #{tpu_custom_call.1} parent=23 // pred_check_branch
          %238 = sbr.rel (%p236) target = $region32
        $region31: #{tpu_custom_call.1} parent=23 // pred_region
          %s239 = sand.u32 %s20, 1
          %s240 = scalar_lea.sflag [#allocation6], %s239
          %s241 = sand.u32 %s74, 1
          %s242 = smul.addr %s241, 8
          %s243 = scalar_lea.vmem [#allocation5], %s242
          %s244 = sadd.s32 %s28, 1
          %s246 = ssub.s32 128, 128
          %247 = vsyncadd %s240, %s246
          %s248 = smul.addr %s244, 2
          %s249 = smul.addr %s27, 24
          %s250 = sadd.s32 %s248, %s249
          %s251 = smul.addr %s250, 64
          %s252 = scalar_lea.hbm %s1, %s251
          %s254 = sshll.u32 %s243, 4
          %s255 = int_to_ptr.vmem [resolvable:$true] %s254
          %257 = dma.hbm_to_vmem [thread:$0]  %s252, 128, %s255, %s240
        $region32: #{tpu_custom_call.1} parent=23 // pred_fallthru
          _
        // Predicated region
        $region33: #{tpu_custom_call.1} parent=23 // pred_check
          %p258 = pneg %p114
        $region34: #{tpu_custom_call.1} parent=23 // pred_check_branch
          %260 = sbr.rel (%p258) target = $region36
        $region35: #{tpu_custom_call.1} parent=23 // pred_region
          %s261 = sand.u32 %s20, 1
          %s262 = scalar_lea.sflag [#allocation6], %s261
          %s263 = sand.u32 %s104, 1
          %s264 = smul.addr %s263, 8
          %s265 = scalar_lea.vmem [#allocation7], %s264
          %s266 = sadd.s32 %s28, 2
          %s268 = ssub.s32 128, 128
          %269 = vsyncadd %s262, %s268
          %s270 = smul.addr %s266, 2
          %s271 = smul.addr %s27, 24
          %s272 = sadd.s32 %s270, %s271
          %s273 = smul.addr %s272, 64
          %s274 = scalar_lea.hbm %s2, %s273
          %s276 = sshll.u32 %s265, 4
          %s277 = int_to_ptr.vmem [resolvable:$true] %s276
          %279 = dma.hbm_to_vmem [thread:$0]  %s274, 128, %s277, %s262
        $region36: #{tpu_custom_call.1} parent=23 // pred_fallthru
          _
      $region24: #{tpu_custom_call.1} parent=5 // pred_fallthru
        _
      %p280 = scmp.le.s32.totalorder 1, %s20
      %p281 = scmp.lt.s32.totalorder %s20, 21
      %p282 = pnand %p280, %p281
      %p283 = pneg %p282
      // Predicated region
      $region37: #{tpu_custom_call.1} parent=5 // pred_check
        _
      $region38: #{tpu_custom_call.1} parent=5 // pred_check_branch
        %285 = sbr.rel (%p282) target = $region40
      $region39: #{tpu_custom_call.1} parent=5 // pred_region
        %s286 = ssub.s32 %s20, 1
        %s287 = sand.u32 %s47, 1
        %s288 = scalar_lea.sflag [#allocation3], %s287
        %s289 = sand.u32 %s47, 1
        %s290 = smul.addr %s289, 8
        %s291 = scalar_lea.vmem [#allocation2], %s290
        // Predicated region
        $region41: #{tpu_custom_call.1} parent=39 // pred_check
          %p292 = pneg %p60
        $region42: #{tpu_custom_call.1} parent=39 // pred_check_branch
          %294 = sbr.rel (%p292) target = $region44
        $region43: #{tpu_custom_call.1} parent=39 // pred_region
          %295 = dma.done %s288, 128
        $region44: #{tpu_custom_call.1} parent=39 // pred_fallthru
          _
        %s296 = sand.u32 %s25, 1
        %s297 = scalar_lea.sflag [#allocation6], %s296
        %s298 = sand.u32 %s77, 1
        %s299 = smul.addr %s298, 8
        %s300 = scalar_lea.vmem [#allocation5], %s299
        // Predicated region
        $region45: #{tpu_custom_call.1} parent=39 // pred_check
          %p301 = pneg %p90
        $region46: #{tpu_custom_call.1} parent=39 // pred_check_branch
          %303 = sbr.rel (%p301) target = $region48
        $region47: #{tpu_custom_call.1} parent=39 // pred_region
          %304 = dma.done %s297, 128
        $region48: #{tpu_custom_call.1} parent=39 // pred_fallthru
          _
        %s305 = sand.u32 %s25, 1
        %s306 = scalar_lea.sflag [#allocation6], %s305
        %s307 = sand.u32 %s107, 1
        %s308 = smul.addr %s307, 8
        %s309 = scalar_lea.vmem [#allocation7], %s308
        // Predicated region
        $region49: #{tpu_custom_call.1} parent=39 // pred_check
          %p310 = pneg %p120
        $region50: #{tpu_custom_call.1} parent=39 // pred_check_branch
          %312 = sbr.rel (%p310) target = $region52
        $region51: #{tpu_custom_call.1} parent=39 // pred_region
          %313 = dma.done %s306, 128
        $region52: #{tpu_custom_call.1} parent=39 // pred_fallthru
          _
        %s314 = sand.u32 %s47, 1
        %s315 = scalar_lea.sflag [#allocation3], %s314
        %s316 = sand.u32 %s47, 1
        %s317 = smul.addr %s316, 8
        %s318 = scalar_lea.vmem [#allocation2], %s317
        %p319 = pneg %p60
        %p320 = pneg %p57
        %s321 = sand.u32 %s25, 1
        %s322 = scalar_lea.sflag [#allocation6], %s321
        %s323 = sand.u32 %s77, 1
        %s324 = smul.addr %s323, 8
        %s325 = scalar_lea.vmem [#allocation5], %s324
        %p326 = pneg %p90
        %p327 = pneg %p87
        %s328 = sand.u32 %s25, 1
        %s329 = scalar_lea.sflag [#allocation6], %s328
        %s330 = sand.u32 %s107, 1
        %s331 = smul.addr %s330, 8
        %s332 = scalar_lea.vmem [#allocation7], %s331
        %p333 = pneg %p120
        %p334 = pneg %p117
        %p335 = pneg %p141
        %p336 = pneg %p138
        %p337 = pneg %p162
        %p338 = pneg %p159
        %p339 = pneg %p190
        %p340 = pneg %p187
        %s341 = sand.u32 %s177, 1
        %s342 = scalar_lea.sflag [#allocation4], %s341
        %s343 = sand.u32 %s177, 1
        %s344 = smul.addr %s343, 2
        %s345 = scalar_lea.vmem [#allocation8], %s344
        %s346 = sadd.s32 %s30, 1
        %s347 = sadd.s32 %s30, 2
        %v348 = vld [vmem:[%s291] sm:$0xff]
        %s349 = scalar_lea.vmem %s3, 36
        %v350 = vld [vmem:[%s349] sm:$0x3]
        %s351 = scalar_lea.vmem %s3, 38
        %v352 = vld [vmem:[%s351] sm:$0x3]
        %v354 = vcombine.high %v348, %v348
        %355 = vrot.lane.b32.xlu0 %v348, 107
        %v356 = vpop.permute.xlu0 %355
        %357 = vrot.lane.b32.xlu0 %v354, 107
        %v358 = vpop.permute.xlu0 %357
        %vm359 = vcmask 875520
        %v360 = vsel %vm359, %v356, %v358
        %vm361 = vcmask 31744
        %v363 = vsel %vm361, %v352, 0
        %vm365 = vcmask 1043456
        %v366 = vsel %vm365, %v360, 0
        %368 = vmatprep.subr.mxu0 0.0
        %369 = vmatpush1.msra.mxu0 0.0
        %370 = vmatprep.subr.mxu0 0.0
        %371 = vmatpush1.msra.mxu0 0.0
        %372 = vmatprep.subr.mxu0 0.0
        %373 = vmatpush1.msra.mxu0 0.0
        %374 = vmatprep.subr.mxu0 0.0
        %375 = vmatpush1.msra.mxu0 0.0
        %376 = vmatprep.subr.mxu0 0.0
        %377 = vmatpush1.msra.mxu0 0.0
        %378 = vmatprep.subr.mxu0 0.0
        %379 = vmatpush1.msra.mxu0 0.0
        %380 = vmatprep.subr.mxu0 0.0
        %381 = vmatpush1.msra.mxu0 0.0
        %382 = vmatprep.subr.mxu0 0.0
        %383 = vmatpush1.msra.mxu0 0.0
        %384 = vmatprep.subr.mxu0 0.0
        %385 = vmatpush1.msra.mxu0 0.0
        %386 = vmatprep.subr.mxu0 0.0
        %387 = vmatpush1.msra.mxu0 0.0
        %388 = vmatprep.subr.mxu0 0.0
        %389 = vmatpush1.msra.mxu0 0.0
        %390 = vmatprep.subr.mxu0 0.0
        %391 = vmatpush1.msra.mxu0 0.0
        %392 = vmatprep.subr.mxu0 0.0
        %393 = vmatpush1.msra.mxu0 0.0
        %394 = vmatprep.subr.mxu0 0.0
        %395 = vmatpush1.msra.mxu0 0.0
        %396 = vmatprep.subr.mxu0 0.0
        %397 = vmatpush1.msra.mxu0 0.0
        %398 = vmatprep.subr.mxu0 0.0
        %399 = vmatpush1.msra.mxu0 %v366
        %400 = vmatprep.subr.mxu0 0.0
        %401 = vmatpush2.msra.mxu0 0.0
        %402 = vmatprep.subr.mxu0 0.0
        %403 = vmatpush2.msra.mxu0 0.0
        %404 = vmatprep.subr.mxu0 0.0
        %405 = vmatpush2.msra.mxu0 0.0
        %406 = vmatprep.subr.mxu0 0.0
        %407 = vmatpush2.msra.mxu0 0.0
        %408 = vmatprep.subr.mxu0 0.0
        %409 = vmatpush2.msra.mxu0 0.0
        %410 = vmatprep.subr.mxu0 0.0
        %411 = vmatpush2.msra.mxu0 0.0
        %412 = vmatprep.subr.mxu0 0.0
        %413 = vmatpush2.msra.mxu0 0.0
        %414 = vmatprep.subr.mxu0 0.0
        %415 = vmatpush2.msra.mxu0 0.0
        %416 = vmatprep.subr.mxu0 0.0
        %417 = vmatpush2.msra.mxu0 0.0
        %418 = vmatprep.subr.mxu0 0.0
        %419 = vmatpush2.msra.mxu0 0.0
        %420 = vmatprep.subr.mxu0 0.0
        %421 = vmatpush2.msra.mxu0 0.0
        %422 = vmatprep.subr.mxu0 0.0
        %423 = vmatpush2.msra.mxu0 0.0
        %424 = vmatprep.subr.mxu0 0.0
        %425 = vmatpush2.msra.mxu0 0.0
        %426 = vmatprep.subr.mxu0 0.0
        %427 = vmatpush2.msra.mxu0 0.0
        %428 = vmatprep.subr.mxu0 0.0
        %429 = vmatpush2.msra.mxu0 0.0
        %430 = vmatprep.subr.mxu0 0.0
        %431 = vmatpush2.msra.mxu0 0.0
        %432 = vmatprep.mubr.f32.mxu0 0.0
        %433 = vmatmul.mubr.f32.gmra.mxu0 %v363
        %v434 = vpop.f32.mrf.mxu0
        %v435 = vadd.f32 0.0, %v434
        %v436 = vpop.f32.mrf.mxu0
        %437 = vdwg.mxu0
        %438 = vrot.lane.b32.xlu0 %v348, 106
        %v439 = vpop.permute.xlu0 %438
        %440 = vrot.lane.b32.xlu0 %v354, 106
        %v441 = vpop.permute.xlu0 %440
        %vm442 = vcmask 867328
        %v443 = vsel %vm442, %v439, %v441
        %v445 = vsel %vm361, %v350, 0
        %v447 = vsel %vm365, %v443, 0
        %449 = vmatprep.subr.mxu0 0.0
        %450 = vmatpush1.msra.mxu0 0.0
        %451 = vmatprep.subr.mxu0 0.0
        %452 = vmatpush1.msra.mxu0 0.0
        %453 = vmatprep.subr.mxu0 0.0
        %454 = vmatpush1.msra.mxu0 0.0
        %455 = vmatprep.subr.mxu0 0.0
        %456 = vmatpush1.msra.mxu0 0.0
        %457 = vmatprep.subr.mxu0 0.0
        %458 = vmatpush1.msra.mxu0 0.0
        %459 = vmatprep.subr.mxu0 0.0
        %460 = vmatpush1.msra.mxu0 0.0
        %461 = vmatprep.subr.mxu0 0.0
        %462 = vmatpush1.msra.mxu0 0.0
        %463 = vmatprep.subr.mxu0 0.0
        %464 = vmatpush1.msra.mxu0 0.0
        %465 = vmatprep.subr.mxu0 0.0
        %466 = vmatpush1.msra.mxu0 0.0
        %467 = vmatprep.subr.mxu0 0.0
        %468 = vmatpush1.msra.mxu0 0.0
        %469 = vmatprep.subr.mxu0 0.0
        %470 = vmatpush1.msra.mxu0 0.0
        %471 = vmatprep.subr.mxu0 0.0
        %472 = vmatpush1.msra.mxu0 0.0
        %473 = vmatprep.subr.mxu0 0.0
        %474 = vmatpush1.msra.mxu0 0.0
        %475 = vmatprep.subr.mxu0 0.0
        %476 = vmatpush1.msra.mxu0 0.0
        %477 = vmatprep.subr.mxu0 0.0
        %478 = vmatpush1.msra.mxu0 0.0
        %479 = vmatprep.subr.mxu0 0.0
        %480 = vmatpush1.msra.mxu0 %v447
        %481 = vmatprep.subr.mxu0 0.0
        %482 = vmatpush2.msra.mxu0 0.0
        %483 = vmatprep.subr.mxu0 0.0
        %484 = vmatpush2.msra.mxu0 0.0
        %485 = vmatprep.subr.mxu0 0.0
        %486 = vmatpush2.msra.mxu0 0.0
        %487 = vmatprep.subr.mxu0 0.0
        %488 = vmatpush2.msra.mxu0 0.0
        %489 = vmatprep.subr.mxu0 0.0
        %490 = vmatpush2.msra.mxu0 0.0
        %491 = vmatprep.subr.mxu0 0.0
        %492 = vmatpush2.msra.mxu0 0.0
        %493 = vmatprep.subr.mxu0 0.0
        %494 = vmatpush2.msra.mxu0 0.0
        %495 = vmatprep.subr.mxu0 0.0
        %496 = vmatpush2.msra.mxu0 0.0
        %497 = vmatprep.subr.mxu0 0.0
        %498 = vmatpush2.msra.mxu0 0.0
        %499 = vmatprep.subr.mxu0 0.0
        %500 = vmatpush2.msra.mxu0 0.0
        %501 = vmatprep.subr.mxu0 0.0
        %502 = vmatpush2.msra.mxu0 0.0
        %503 = vmatprep.subr.mxu0 0.0
        %504 = vmatpush2.msra.mxu0 0.0
        %505 = vmatprep.subr.mxu0 0.0
        %506 = vmatpush2.msra.mxu0 0.0
        %507 = vmatprep.subr.mxu0 0.0
        %508 = vmatpush2.msra.mxu0 0.0
        %509 = vmatprep.subr.mxu0 0.0
        %510 = vmatpush2.msra.mxu0 0.0
        %511 = vmatprep.subr.mxu0 0.0
        %512 = vmatpush2.msra.mxu0 0.0
        %513 = vmatprep.mubr.f32.mxu0 0.0
        %514 = vmatmul.mubr.f32.gmra.mxu0 %v445
        %v515 = vpop.f32.mrf.mxu0
        %v516 = vadd.f32 %v435, %v515
        %v517 = vpop.f32.mrf.mxu0
        %518 = vdwg.mxu0
        %v519 = vld [vmem:[%s291] sm:$0xff]
        %s520 = scalar_lea.vmem %s3, 40
        %v521 = vld [vmem:[%s520] sm:$0x3]
        %v523 = vcombine.high %v519, %v519
        %524 = vrot.lane.b32.xlu0 %v519, 108
        %v525 = vpop.permute.xlu0 %524
        %526 = vrot.lane.b32.xlu0 %v523, 108
        %v527 = vpop.permute.xlu0 %526
        %vm528 = vcmask 883712
        %v529 = vsel %vm528, %v525, %v527
        %v531 = vsel %vm361, %v521, 0
        %v533 = vsel %vm365, %v529, 0
        %535 = vmatprep.subr.mxu0 0.0
        %536 = vmatpush1.msra.mxu0 0.0
        %537 = vmatprep.subr.mxu0 0.0
        %538 = vmatpush1.msra.mxu0 0.0
        %539 = vmatprep.subr.mxu0 0.0
        %540 = vmatpush1.msra.mxu0 0.0
        %541 = vmatprep.subr.mxu0 0.0
        %542 = vmatpush1.msra.mxu0 0.0
        %543 = vmatprep.subr.mxu0 0.0
        %544 = vmatpush1.msra.mxu0 0.0
        %545 = vmatprep.subr.mxu0 0.0
        %546 = vmatpush1.msra.mxu0 0.0
        %547 = vmatprep.subr.mxu0 0.0
        %548 = vmatpush1.msra.mxu0 0.0
        %549 = vmatprep.subr.mxu0 0.0
        %550 = vmatpush1.msra.mxu0 0.0
        %551 = vmatprep.subr.mxu0 0.0
        %552 = vmatpush1.msra.mxu0 0.0
        %553 = vmatprep.subr.mxu0 0.0
        %554 = vmatpush1.msra.mxu0 0.0
        %555 = vmatprep.subr.mxu0 0.0
        %556 = vmatpush1.msra.mxu0 0.0
        %557 = vmatprep.subr.mxu0 0.0
        %558 = vmatpush1.msra.mxu0 0.0
        %559 = vmatprep.subr.mxu0 0.0
        %560 = vmatpush1.msra.mxu0 0.0
        %561 = vmatprep.subr.mxu0 0.0
        %562 = vmatpush1.msra.mxu0 0.0
        %563 = vmatprep.subr.mxu0 0.0
        %564 = vmatpush1.msra.mxu0 0.0
        %565 = vmatprep.subr.mxu0 0.0
        %566 = vmatpush1.msra.mxu0 %v533
        %567 = vmatprep.subr.mxu0 0.0
        %568 = vmatpush2.msra.mxu0 0.0
        %569 = vmatprep.subr.mxu0 0.0
        %570 = vmatpush2.msra.mxu0 0.0
        %571 = vmatprep.subr.mxu0 0.0
        %572 = vmatpush2.msra.mxu0 0.0
        %573 = vmatprep.subr.mxu0 0.0
        %574 = vmatpush2.msra.mxu0 0.0
        %575 = vmatprep.subr.mxu0 0.0
        %576 = vmatpush2.msra.mxu0 0.0
        %577 = vmatprep.subr.mxu0 0.0
        %578 = vmatpush2.msra.mxu0 0.0
        %579 = vmatprep.subr.mxu0 0.0
        %580 = vmatpush2.msra.mxu0 0.0
        %581 = vmatprep.subr.mxu0 0.0
        %582 = vmatpush2.msra.mxu0 0.0
        %583 = vmatprep.subr.mxu0 0.0
        %584 = vmatpush2.msra.mxu0 0.0
        %585 = vmatprep.subr.mxu0 0.0
        %586 = vmatpush2.msra.mxu0 0.0
        %587 = vmatprep.subr.mxu0 0.0
        %588 = vmatpush2.msra.mxu0 0.0
        %589 = vmatprep.subr.mxu0 0.0
        %590 = vmatpush2.msra.mxu0 0.0
        %591 = vmatprep.subr.mxu0 0.0
        %592 = vmatpush2.msra.mxu0 0.0
        %593 = vmatprep.subr.mxu0 0.0
        %594 = vmatpush2.msra.mxu0 0.0
        %595 = vmatprep.subr.mxu0 0.0
        %596 = vmatpush2.msra.mxu0 0.0
        %597 = vmatprep.subr.mxu0 0.0
        %598 = vmatpush2.msra.mxu0 0.0
        %599 = vmatprep.mubr.f32.mxu0 0.0
        %600 = vmatmul.mubr.f32.gmra.mxu0 %v531
        %v601 = vpop.f32.mrf.mxu0
        %v602 = vadd.f32 0.0, %v601
        %v603 = vpop.f32.mrf.mxu0
        %604 = vdwg.mxu0
        %v605 = vadd.f32 %v516, %v602
        %v606 = vld [vmem:[%s291] sm:$0xff]
        %s607 = scalar_lea.vmem %s3, 42
        %v608 = vld [vmem:[%s607] sm:$0x3]
        %v610 = vcombine.high %v606, %v606
        %611 = vrot.lane.b32.xlu0 %v606, 116
        %v612 = vpop.permute.xlu0 %611
        %613 = vrot.lane.b32.xlu0 %v610, 116
        %v614 = vpop.permute.xlu0 %613
        %vm615 = vcmask 949248
        %v616 = vsel %vm615, %v612, %v614
        %v618 = vsel %vm361, %v608, 0
        %v620 = vsel %vm365, %v616, 0
        %622 = vmatprep.subr.mxu0 0.0
        %623 = vmatpush1.msra.mxu0 0.0
        %624 = vmatprep.subr.mxu0 0.0
        %625 = vmatpush1.msra.mxu0 0.0
        %626 = vmatprep.subr.mxu0 0.0
        %627 = vmatpush1.msra.mxu0 0.0
        %628 = vmatprep.subr.mxu0 0.0
        %629 = vmatpush1.msra.mxu0 0.0
        %630 = vmatprep.subr.mxu0 0.0
        %631 = vmatpush1.msra.mxu0 0.0
        %632 = vmatprep.subr.mxu0 0.0
        %633 = vmatpush1.msra.mxu0 0.0
        %634 = vmatprep.subr.mxu0 0.0
        %635 = vmatpush1.msra.mxu0 0.0
        %636 = vmatprep.subr.mxu0 0.0
        %637 = vmatpush1.msra.mxu0 0.0
        %638 = vmatprep.subr.mxu0 0.0
        %639 = vmatpush1.msra.mxu0 0.0
        %640 = vmatprep.subr.mxu0 0.0
        %641 = vmatpush1.msra.mxu0 0.0
        %642 = vmatprep.subr.mxu0 0.0
        %643 = vmatpush1.msra.mxu0 0.0
        %644 = vmatprep.subr.mxu0 0.0
        %645 = vmatpush1.msra.mxu0 0.0
        %646 = vmatprep.subr.mxu0 0.0
        %647 = vmatpush1.msra.mxu0 0.0
        %648 = vmatprep.subr.mxu0 0.0
        %649 = vmatpush1.msra.mxu0 0.0
        %650 = vmatprep.subr.mxu0 0.0
        %651 = vmatpush1.msra.mxu0 0.0
        %652 = vmatprep.subr.mxu0 0.0
        %653 = vmatpush1.msra.mxu0 %v620
        %654 = vmatprep.subr.mxu0 0.0
        %655 = vmatpush2.msra.mxu0 0.0
        %656 = vmatprep.subr.mxu0 0.0
        %657 = vmatpush2.msra.mxu0 0.0
        %658 = vmatprep.subr.mxu0 0.0
        %659 = vmatpush2.msra.mxu0 0.0
        %660 = vmatprep.subr.mxu0 0.0
        %661 = vmatpush2.msra.mxu0 0.0
        %662 = vmatprep.subr.mxu0 0.0
        %663 = vmatpush2.msra.mxu0 0.0
        %664 = vmatprep.subr.mxu0 0.0
        %665 = vmatpush2.msra.mxu0 0.0
        %666 = vmatprep.subr.mxu0 0.0
        %667 = vmatpush2.msra.mxu0 0.0
        %668 = vmatprep.subr.mxu0 0.0
        %669 = vmatpush2.msra.mxu0 0.0
        %670 = vmatprep.subr.mxu0 0.0
        %671 = vmatpush2.msra.mxu0 0.0
        %672 = vmatprep.subr.mxu0 0.0
        %673 = vmatpush2.msra.mxu0 0.0
        %674 = vmatprep.subr.mxu0 0.0
        %675 = vmatpush2.msra.mxu0 0.0
        %676 = vmatprep.subr.mxu0 0.0
        %677 = vmatpush2.msra.mxu0 0.0
        %678 = vmatprep.subr.mxu0 0.0
        %679 = vmatpush2.msra.mxu0 0.0
        %680 = vmatprep.subr.mxu0 0.0
        %681 = vmatpush2.msra.mxu0 0.0
        %682 = vmatprep.subr.mxu0 0.0
        %683 = vmatpush2.msra.mxu0 0.0
        %684 = vmatprep.subr.mxu0 0.0
        %685 = vmatpush2.msra.mxu0 0.0
        %686 = vmatprep.mubr.f32.mxu0 0.0
        %687 = vmatmul.mubr.f32.gmra.mxu0 %v618
        %v688 = vpop.f32.mrf.mxu0
        %v689 = vadd.f32 0.0, %v688
        %v690 = vpop.f32.mrf.mxu0
        %691 = vdwg.mxu0
        %v692 = vadd.f32 %v605, %v689
        %v693 = vld [vmem:[%s291] sm:$0xff]
        %s694 = scalar_lea.vmem %s3, 44
        %v695 = vld [vmem:[%s694] sm:$0x3]
        %v697 = vcombine.high %v693, %v693
        %698 = vrot.lane.b32.xlu0 %v693, 117
        %v699 = vpop.permute.xlu0 %698
        %700 = vrot.lane.b32.xlu0 %v697, 117
        %v701 = vpop.permute.xlu0 %700
        %vm702 = vcmask 957440
        %v703 = vsel %vm702, %v699, %v701
        %v705 = vsel %vm361, %v695, 0
        %v707 = vsel %vm365, %v703, 0
        %709 = vmatprep.subr.mxu0 0.0
        %710 = vmatpush1.msra.mxu0 0.0
        %711 = vmatprep.subr.mxu0 0.0
        %712 = vmatpush1.msra.mxu0 0.0
        %713 = vmatprep.subr.mxu0 0.0
        %714 = vmatpush1.msra.mxu0 0.0
        %715 = vmatprep.subr.mxu0 0.0
        %716 = vmatpush1.msra.mxu0 0.0
        %717 = vmatprep.subr.mxu0 0.0
        %718 = vmatpush1.msra.mxu0 0.0
        %719 = vmatprep.subr.mxu0 0.0
        %720 = vmatpush1.msra.mxu0 0.0
        %721 = vmatprep.subr.mxu0 0.0
        %722 = vmatpush1.msra.mxu0 0.0
        %723 = vmatprep.subr.mxu0 0.0
        %724 = vmatpush1.msra.mxu0 0.0
        %725 = vmatprep.subr.mxu0 0.0
        %726 = vmatpush1.msra.mxu0 0.0
        %727 = vmatprep.subr.mxu0 0.0
        %728 = vmatpush1.msra.mxu0 0.0
        %729 = vmatprep.subr.mxu0 0.0
        %730 = vmatpush1.msra.mxu0 0.0
        %731 = vmatprep.subr.mxu0 0.0
        %732 = vmatpush1.msra.mxu0 0.0
        %733 = vmatprep.subr.mxu0 0.0
        %734 = vmatpush1.msra.mxu0 0.0
        %735 = vmatprep.subr.mxu0 0.0
        %736 = vmatpush1.msra.mxu0 0.0
        %737 = vmatprep.subr.mxu0 0.0
        %738 = vmatpush1.msra.mxu0 0.0
        %739 = vmatprep.subr.mxu0 0.0
        %740 = vmatpush1.msra.mxu0 %v707
        %741 = vmatprep.subr.mxu0 0.0
        %742 = vmatpush2.msra.mxu0 0.0
        %743 = vmatprep.subr.mxu0 0.0
        %744 = vmatpush2.msra.mxu0 0.0
        %745 = vmatprep.subr.mxu0 0.0
        %746 = vmatpush2.msra.mxu0 0.0
        %747 = vmatprep.subr.mxu0 0.0
        %748 = vmatpush2.msra.mxu0 0.0
        %749 = vmatprep.subr.mxu0 0.0
        %750 = vmatpush2.msra.mxu0 0.0
        %751 = vmatprep.subr.mxu0 0.0
        %752 = vmatpush2.msra.mxu0 0.0
        %753 = vmatprep.subr.mxu0 0.0
        %754 = vmatpush2.msra.mxu0 0.0
        %755 = vmatprep.subr.mxu0 0.0
        %756 = vmatpush2.msra.mxu0 0.0
        %757 = vmatprep.subr.mxu0 0.0
        %758 = vmatpush2.msra.mxu0 0.0
        %759 = vmatprep.subr.mxu0 0.0
        %760 = vmatpush2.msra.mxu0 0.0
        %761 = vmatprep.subr.mxu0 0.0
        %762 = vmatpush2.msra.mxu0 0.0
        %763 = vmatprep.subr.mxu0 0.0
        %764 = vmatpush2.msra.mxu0 0.0
        %765 = vmatprep.subr.mxu0 0.0
        %766 = vmatpush2.msra.mxu0 0.0
        %767 = vmatprep.subr.mxu0 0.0
        %768 = vmatpush2.msra.mxu0 0.0
        %769 = vmatprep.subr.mxu0 0.0
        %770 = vmatpush2.msra.mxu0 0.0
        %771 = vmatprep.subr.mxu0 0.0
        %772 = vmatpush2.msra.mxu0 0.0
        %773 = vmatprep.mubr.f32.mxu0 0.0
        %774 = vmatmul.mubr.f32.gmra.mxu0 %v705
        %v775 = vpop.f32.mrf.mxu0
        %v776 = vadd.f32 0.0, %v775
        %v777 = vpop.f32.mrf.mxu0
        %778 = vdwg.mxu0
        %v779 = vadd.f32 %v692, %v776
        %v780 = vld [vmem:[%s291] sm:$0xff]
        %s781 = scalar_lea.vmem %s3, 46
        %v782 = vld [vmem:[%s781] sm:$0x3]
        %v784 = vcombine.high %v780, %v780
        %785 = vrot.lane.b32.xlu0 %v780, 118
        %v786 = vpop.permute.xlu0 %785
        %787 = vrot.lane.b32.xlu0 %v784, 118
        %v788 = vpop.permute.xlu0 %787
        %vm789 = vcmask 965632
        %v790 = vsel %vm789, %v786, %v788
        %v792 = vsel %vm361, %v782, 0
        %v794 = vsel %vm365, %v790, 0
        %796 = vmatprep.subr.mxu0 0.0
        %797 = vmatpush1.msra.mxu0 0.0
        %798 = vmatprep.subr.mxu0 0.0
        %799 = vmatpush1.msra.mxu0 0.0
        %800 = vmatprep.subr.mxu0 0.0
        %801 = vmatpush1.msra.mxu0 0.0
        %802 = vmatprep.subr.mxu0 0.0
        %803 = vmatpush1.msra.mxu0 0.0
        %804 = vmatprep.subr.mxu0 0.0
        %805 = vmatpush1.msra.mxu0 0.0
        %806 = vmatprep.subr.mxu0 0.0
        %807 = vmatpush1.msra.mxu0 0.0
        %808 = vmatprep.subr.mxu0 0.0
        %809 = vmatpush1.msra.mxu0 0.0
        %810 = vmatprep.subr.mxu0 0.0
        %811 = vmatpush1.msra.mxu0 0.0
        %812 = vmatprep.subr.mxu0 0.0
        %813 = vmatpush1.msra.mxu0 0.0
        %814 = vmatprep.subr.mxu0 0.0
        %815 = vmatpush1.msra.mxu0 0.0
        %816 = vmatprep.subr.mxu0 0.0
        %817 = vmatpush1.msra.mxu0 0.0
        %818 = vmatprep.subr.mxu0 0.0
        %819 = vmatpush1.msra.mxu0 0.0
        %820 = vmatprep.subr.mxu0 0.0
        %821 = vmatpush1.msra.mxu0 0.0
        %822 = vmatprep.subr.mxu0 0.0
        %823 = vmatpush1.msra.mxu0 0.0
        %824 = vmatprep.subr.mxu0 0.0
        %825 = vmatpush1.msra.mxu0 0.0
        %826 = vmatprep.subr.mxu0 0.0
        %827 = vmatpush1.msra.mxu0 %v794
        %828 = vmatprep.subr.mxu0 0.0
        %829 = vmatpush2.msra.mxu0 0.0
        %830 = vmatprep.subr.mxu0 0.0
        %831 = vmatpush2.msra.mxu0 0.0
        %832 = vmatprep.subr.mxu0 0.0
        %833 = vmatpush2.msra.mxu0 0.0
        %834 = vmatprep.subr.mxu0 0.0
        %835 = vmatpush2.msra.mxu0 0.0
        %836 = vmatprep.subr.mxu0 0.0
        %837 = vmatpush2.msra.mxu0 0.0
        %838 = vmatprep.subr.mxu0 0.0
        %839 = vmatpush2.msra.mxu0 0.0
        %840 = vmatprep.subr.mxu0 0.0
        %841 = vmatpush2.msra.mxu0 0.0
        %842 = vmatprep.subr.mxu0 0.0
        %843 = vmatpush2.msra.mxu0 0.0
        %844 = vmatprep.subr.mxu0 0.0
        %845 = vmatpush2.msra.mxu0 0.0
        %846 = vmatprep.subr.mxu0 0.0
        %847 = vmatpush2.msra.mxu0 0.0
        %848 = vmatprep.subr.mxu0 0.0
        %849 = vmatpush2.msra.mxu0 0.0
        %850 = vmatprep.subr.mxu0 0.0
        %851 = vmatpush2.msra.mxu0 0.0
        %852 = vmatprep.subr.mxu0 0.0
        %853 = vmatpush2.msra.mxu0 0.0
        %854 = vmatprep.subr.mxu0 0.0
        %855 = vmatpush2.msra.mxu0 0.0
        %856 = vmatprep.subr.mxu0 0.0
        %857 = vmatpush2.msra.mxu0 0.0
        %858 = vmatprep.subr.mxu0 0.0
        %859 = vmatpush2.msra.mxu0 0.0
        %860 = vmatprep.mubr.f32.mxu0 0.0
        %861 = vmatmul.mubr.f32.gmra.mxu0 %v792
        %v862 = vpop.f32.mrf.mxu0
        %v863 = vadd.f32 0.0, %v862
        %v864 = vpop.f32.mrf.mxu0
        %865 = vdwg.mxu0
        %v866 = vadd.f32 %v779, %v863
        %v867 = vld [vmem:[%s291] sm:$0xff]
        %s868 = scalar_lea.vmem %s3, 48
        %v869 = vld [vmem:[%s868] sm:$0x3]
        %v871 = vcombine.high %v867, %v867
        %872 = vrot.lane.b32.xlu0 %v867, 126
        %v873 = vpop.permute.xlu0 %872
        %874 = vrot.lane.b32.xlu0 %v871, 126
        %v875 = vpop.permute.xlu0 %874
        %vm876 = vcmask 1031168
        %v877 = vsel %vm876, %v873, %v875
        %v879 = vsel %vm361, %v869, 0
        %v881 = vsel %vm365, %v877, 0
        %883 = vmatprep.subr.mxu0 0.0
        %884 = vmatpush1.msra.mxu0 0.0
        %885 = vmatprep.subr.mxu0 0.0
        %886 = vmatpush1.msra.mxu0 0.0
        %887 = vmatprep.subr.mxu0 0.0
        %888 = vmatpush1.msra.mxu0 0.0
        %889 = vmatprep.subr.mxu0 0.0
        %890 = vmatpush1.msra.mxu0 0.0
        %891 = vmatprep.subr.mxu0 0.0
        %892 = vmatpush1.msra.mxu0 0.0
        %893 = vmatprep.subr.mxu0 0.0
        %894 = vmatpush1.msra.mxu0 0.0
        %895 = vmatprep.subr.mxu0 0.0
        %896 = vmatpush1.msra.mxu0 0.0
        %897 = vmatprep.subr.mxu0 0.0
        %898 = vmatpush1.msra.mxu0 0.0
        %899 = vmatprep.subr.mxu0 0.0
        %900 = vmatpush1.msra.mxu0 0.0
        %901 = vmatprep.subr.mxu0 0.0
        %902 = vmatpush1.msra.mxu0 0.0
        %903 = vmatprep.subr.mxu0 0.0
        %904 = vmatpush1.msra.mxu0 0.0
        %905 = vmatprep.subr.mxu0 0.0
        %906 = vmatpush1.msra.mxu0 0.0
        %907 = vmatprep.subr.mxu0 0.0
        %908 = vmatpush1.msra.mxu0 0.0
        %909 = vmatprep.subr.mxu0 0.0
        %910 = vmatpush1.msra.mxu0 0.0
        %911 = vmatprep.subr.mxu0 0.0
        %912 = vmatpush1.msra.mxu0 0.0
        %913 = vmatprep.subr.mxu0 0.0
        %914 = vmatpush1.msra.mxu0 %v881
        %915 = vmatprep.subr.mxu0 0.0
        %916 = vmatpush2.msra.mxu0 0.0
        %917 = vmatprep.subr.mxu0 0.0
        %918 = vmatpush2.msra.mxu0 0.0
        %919 = vmatprep.subr.mxu0 0.0
        %920 = vmatpush2.msra.mxu0 0.0
        %921 = vmatprep.subr.mxu0 0.0
        %922 = vmatpush2.msra.mxu0 0.0
        %923 = vmatprep.subr.mxu0 0.0
        %924 = vmatpush2.msra.mxu0 0.0
        %925 = vmatprep.subr.mxu0 0.0
        %926 = vmatpush2.msra.mxu0 0.0
        %927 = vmatprep.subr.mxu0 0.0
        %928 = vmatpush2.msra.mxu0 0.0
        %929 = vmatprep.subr.mxu0 0.0
        %930 = vmatpush2.msra.mxu0 0.0
        %931 = vmatprep.subr.mxu0 0.0
        %932 = vmatpush2.msra.mxu0 0.0
        %933 = vmatprep.subr.mxu0 0.0
        %934 = vmatpush2.msra.mxu0 0.0
        %935 = vmatprep.subr.mxu0 0.0
        %936 = vmatpush2.msra.mxu0 0.0
        %937 = vmatprep.subr.mxu0 0.0
        %938 = vmatpush2.msra.mxu0 0.0
        %939 = vmatprep.subr.mxu0 0.0
        %940 = vmatpush2.msra.mxu0 0.0
        %941 = vmatprep.subr.mxu0 0.0
        %942 = vmatpush2.msra.mxu0 0.0
        %943 = vmatprep.subr.mxu0 0.0
        %944 = vmatpush2.msra.mxu0 0.0
        %945 = vmatprep.subr.mxu0 0.0
        %946 = vmatpush2.msra.mxu0 0.0
        %947 = vmatprep.mubr.f32.mxu0 0.0
        %948 = vmatmul.mubr.f32.gmra.mxu0 %v879
        %v949 = vpop.f32.mrf.mxu0
        %v950 = vadd.f32 0.0, %v949
        %v951 = vpop.f32.mrf.mxu0
        %952 = vdwg.mxu0
        %v953 = vadd.f32 %v866, %v950
        %v954 = vld [vmem:[%s291] sm:$0xff]
        %s955 = scalar_lea.vmem %s3, 50
        %v956 = vld [vmem:[%s955] sm:$0x3]
        %v958 = vcombine.high %v954, %v954
        %959 = vrot.lane.b32.xlu0 %v954, 127
        %v960 = vpop.permute.xlu0 %959
        %961 = vrot.lane.b32.xlu0 %v958, 127
        %v962 = vpop.permute.xlu0 %961
        %vm963 = vcmask 1039360
        %v964 = vsel %vm963, %v960, %v962
        %v966 = vsel %vm361, %v956, 0
        %v968 = vsel %vm365, %v964, 0
        %970 = vmatprep.subr.mxu0 0.0
        %971 = vmatpush1.msra.mxu0 0.0
        %972 = vmatprep.subr.mxu0 0.0
        %973 = vmatpush1.msra.mxu0 0.0
        %974 = vmatprep.subr.mxu0 0.0
        %975 = vmatpush1.msra.mxu0 0.0
        %976 = vmatprep.subr.mxu0 0.0
        %977 = vmatpush1.msra.mxu0 0.0
        %978 = vmatprep.subr.mxu0 0.0
        %979 = vmatpush1.msra.mxu0 0.0
        %980 = vmatprep.subr.mxu0 0.0
        %981 = vmatpush1.msra.mxu0 0.0
        %982 = vmatprep.subr.mxu0 0.0
        %983 = vmatpush1.msra.mxu0 0.0
        %984 = vmatprep.subr.mxu0 0.0
        %985 = vmatpush1.msra.mxu0 0.0
        %986 = vmatprep.subr.mxu0 0.0
        %987 = vmatpush1.msra.mxu0 0.0
        %988 = vmatprep.subr.mxu0 0.0
        %989 = vmatpush1.msra.mxu0 0.0
        %990 = vmatprep.subr.mxu0 0.0
        %991 = vmatpush1.msra.mxu0 0.0
        %992 = vmatprep.subr.mxu0 0.0
        %993 = vmatpush1.msra.mxu0 0.0
        %994 = vmatprep.subr.mxu0 0.0
        %995 = vmatpush1.msra.mxu0 0.0
        %996 = vmatprep.subr.mxu0 0.0
        %997 = vmatpush1.msra.mxu0 0.0
        %998 = vmatprep.subr.mxu0 0.0
        %999 = vmatpush1.msra.mxu0 0.0
        %1000 = vmatprep.subr.mxu0 0.0
        %1001 = vmatpush1.msra.mxu0 %v968
        %1002 = vmatprep.subr.mxu0 0.0
        %1003 = vmatpush2.msra.mxu0 0.0
        %1004 = vmatprep.subr.mxu0 0.0
        %1005 = vmatpush2.msra.mxu0 0.0
        %1006 = vmatprep.subr.mxu0 0.0
        %1007 = vmatpush2.msra.mxu0 0.0
        %1008 = vmatprep.subr.mxu0 0.0
        %1009 = vmatpush2.msra.mxu0 0.0
        %1010 = vmatprep.subr.mxu0 0.0
        %1011 = vmatpush2.msra.mxu0 0.0
        %1012 = vmatprep.subr.mxu0 0.0
        %1013 = vmatpush2.msra.mxu0 0.0
        %1014 = vmatprep.subr.mxu0 0.0
        %1015 = vmatpush2.msra.mxu0 0.0
        %1016 = vmatprep.subr.mxu0 0.0
        %1017 = vmatpush2.msra.mxu0 0.0
        %1018 = vmatprep.subr.mxu0 0.0
        %1019 = vmatpush2.msra.mxu0 0.0
        %1020 = vmatprep.subr.mxu0 0.0
        %1021 = vmatpush2.msra.mxu0 0.0
        %1022 = vmatprep.subr.mxu0 0.0
        %1023 = vmatpush2.msra.mxu0 0.0
        %1024 = vmatprep.subr.mxu0 0.0
        %1025 = vmatpush2.msra.mxu0 0.0
        %1026 = vmatprep.subr.mxu0 0.0
        %1027 = vmatpush2.msra.mxu0 0.0
        %1028 = vmatprep.subr.mxu0 0.0
        %1029 = vmatpush2.msra.mxu0 0.0
        %1030 = vmatprep.subr.mxu0 0.0
        %1031 = vmatpush2.msra.mxu0 0.0
        %1032 = vmatprep.subr.mxu0 0.0
        %1033 = vmatpush2.msra.mxu0 0.0
        %1034 = vmatprep.mubr.f32.mxu0 0.0
        %1035 = vmatmul.mubr.f32.gmra.mxu0 %v966
        %v1036 = vpop.f32.mrf.mxu0
        %v1037 = vadd.f32 0.0, %v1036
        %v1038 = vpop.f32.mrf.mxu0
        %1039 = vdwg.mxu0
        %v1040 = vadd.f32 %v953, %v1037
        %v1041 = vld [vmem:[%s291] sm:$0xf]
        %s1042 = scalar_lea.vmem %s3, 52
        %v1043 = vld [vmem:[%s1042] sm:$0x3]
        %v1045 = vsel %vm361, %v1043, 0
        %v1048 = vsel %vm365, %v1041, 0
        %1050 = vmatprep.subr.mxu0 0.0
        %1051 = vmatpush1.msra.mxu0 0.0
        %1052 = vmatprep.subr.mxu0 0.0
        %1053 = vmatpush1.msra.mxu0 0.0
        %1054 = vmatprep.subr.mxu0 0.0
        %1055 = vmatpush1.msra.mxu0 0.0
        %1056 = vmatprep.subr.mxu0 0.0
        %1057 = vmatpush1.msra.mxu0 0.0
        %1058 = vmatprep.subr.mxu0 0.0
        %1059 = vmatpush1.msra.mxu0 0.0
        %1060 = vmatprep.subr.mxu0 0.0
        %1061 = vmatpush1.msra.mxu0 0.0
        %1062 = vmatprep.subr.mxu0 0.0
        %1063 = vmatpush1.msra.mxu0 0.0
        %1064 = vmatprep.subr.mxu0 0.0
        %1065 = vmatpush1.msra.mxu0 0.0
        %1066 = vmatprep.subr.mxu0 0.0
        %1067 = vmatpush1.msra.mxu0 0.0
        %1068 = vmatprep.subr.mxu0 0.0
        %1069 = vmatpush1.msra.mxu0 0.0
        %1070 = vmatprep.subr.mxu0 0.0
        %1071 = vmatpush1.msra.mxu0 0.0
        %1072 = vmatprep.subr.mxu0 0.0
        %1073 = vmatpush1.msra.mxu0 0.0
        %1074 = vmatprep.subr.mxu0 0.0
        %1075 = vmatpush1.msra.mxu0 0.0
        %1076 = vmatprep.subr.mxu0 0.0
        %1077 = vmatpush1.msra.mxu0 0.0
        %1078 = vmatprep.subr.mxu0 0.0
        %1079 = vmatpush1.msra.mxu0 0.0
        %1080 = vmatprep.subr.mxu0 0.0
        %1081 = vmatpush1.msra.mxu0 %v1048
        %1082 = vmatprep.subr.mxu0 0.0
        %1083 = vmatpush2.msra.mxu0 0.0
        %1084 = vmatprep.subr.mxu0 0.0
        %1085 = vmatpush2.msra.mxu0 0.0
        %1086 = vmatprep.subr.mxu0 0.0
        %1087 = vmatpush2.msra.mxu0 0.0
        %1088 = vmatprep.subr.mxu0 0.0
        %1089 = vmatpush2.msra.mxu0 0.0
        %1090 = vmatprep.subr.mxu0 0.0
        %1091 = vmatpush2.msra.mxu0 0.0
        %1092 = vmatprep.subr.mxu0 0.0
        %1093 = vmatpush2.msra.mxu0 0.0
        %1094 = vmatprep.subr.mxu0 0.0
        %1095 = vmatpush2.msra.mxu0 0.0
        %1096 = vmatprep.subr.mxu0 0.0
        %1097 = vmatpush2.msra.mxu0 0.0
        %1098 = vmatprep.subr.mxu0 0.0
        %1099 = vmatpush2.msra.mxu0 0.0
        %1100 = vmatprep.subr.mxu0 0.0
        %1101 = vmatpush2.msra.mxu0 0.0
        %1102 = vmatprep.subr.mxu0 0.0
        %1103 = vmatpush2.msra.mxu0 0.0
        %1104 = vmatprep.subr.mxu0 0.0
        %1105 = vmatpush2.msra.mxu0 0.0
        %1106 = vmatprep.subr.mxu0 0.0
        %1107 = vmatpush2.msra.mxu0 0.0
        %1108 = vmatprep.subr.mxu0 0.0
        %1109 = vmatpush2.msra.mxu0 0.0
        %1110 = vmatprep.subr.mxu0 0.0
        %1111 = vmatpush2.msra.mxu0 0.0
        %1112 = vmatprep.subr.mxu0 0.0
        %1113 = vmatpush2.msra.mxu0 0.0
        %1114 = vmatprep.mubr.f32.mxu0 0.0
        %1115 = vmatmul.mubr.f32.gmra.mxu0 %v1045
        %v1116 = vpop.f32.mrf.mxu0
        %v1117 = vadd.f32 0.0, %v1116
        %v1118 = vpop.f32.mrf.mxu0
        %1119 = vdwg.mxu0
        %v1120 = vadd.f32 %v1040, %v1117
        %v1121 = vld [vmem:[%s300] sm:$0xff]
        %s1122 = scalar_lea.vmem %s3, 18
        %v1123 = vld [vmem:[%s1122] sm:$0x3]
        %v1125 = vcombine.high %v1121, %v1121
        %1126 = vrot.lane.b32.xlu0 %v1121, 106
        %v1127 = vpop.permute.xlu0 %1126
        %1128 = vrot.lane.b32.xlu0 %v1125, 106
        %v1129 = vpop.permute.xlu0 %1128
        %v1130 = vsel %vm442, %v1127, %v1129
        %v1132 = vsel %vm361, %v1123, 0
        %v1134 = vsel %vm365, %v1130, 0
        %1136 = vmatprep.subr.mxu0 0.0
        %1137 = vmatpush1.msra.mxu0 0.0
        %1138 = vmatprep.subr.mxu0 0.0
        %1139 = vmatpush1.msra.mxu0 0.0
        %1140 = vmatprep.subr.mxu0 0.0
        %1141 = vmatpush1.msra.mxu0 0.0
        %1142 = vmatprep.subr.mxu0 0.0
        %1143 = vmatpush1.msra.mxu0 0.0
        %1144 = vmatprep.subr.mxu0 0.0
        %1145 = vmatpush1.msra.mxu0 0.0
        %1146 = vmatprep.subr.mxu0 0.0
        %1147 = vmatpush1.msra.mxu0 0.0
        %1148 = vmatprep.subr.mxu0 0.0
        %1149 = vmatpush1.msra.mxu0 0.0
        %1150 = vmatprep.subr.mxu0 0.0
        %1151 = vmatpush1.msra.mxu0 0.0
        %1152 = vmatprep.subr.mxu0 0.0
        %1153 = vmatpush1.msra.mxu0 0.0
        %1154 = vmatprep.subr.mxu0 0.0
        %1155 = vmatpush1.msra.mxu0 0.0
        %1156 = vmatprep.subr.mxu0 0.0
        %1157 = vmatpush1.msra.mxu0 0.0
        %1158 = vmatprep.subr.mxu0 0.0
        %1159 = vmatpush1.msra.mxu0 0.0
        %1160 = vmatprep.subr.mxu0 0.0
        %1161 = vmatpush1.msra.mxu0 0.0
        %1162 = vmatprep.subr.mxu0 0.0
        %1163 = vmatpush1.msra.mxu0 0.0
        %1164 = vmatprep.subr.mxu0 0.0
        %1165 = vmatpush1.msra.mxu0 0.0
        %1166 = vmatprep.subr.mxu0 0.0
        %1167 = vmatpush1.msra.mxu0 %v1134
        %1168 = vmatprep.subr.mxu0 0.0
        %1169 = vmatpush2.msra.mxu0 0.0
        %1170 = vmatprep.subr.mxu0 0.0
        %1171 = vmatpush2.msra.mxu0 0.0
        %1172 = vmatprep.subr.mxu0 0.0
        %1173 = vmatpush2.msra.mxu0 0.0
        %1174 = vmatprep.subr.mxu0 0.0
        %1175 = vmatpush2.msra.mxu0 0.0
        %1176 = vmatprep.subr.mxu0 0.0
        %1177 = vmatpush2.msra.mxu0 0.0
        %1178 = vmatprep.subr.mxu0 0.0
        %1179 = vmatpush2.msra.mxu0 0.0
        %1180 = vmatprep.subr.mxu0 0.0
        %1181 = vmatpush2.msra.mxu0 0.0
        %1182 = vmatprep.subr.mxu0 0.0
        %1183 = vmatpush2.msra.mxu0 0.0
        %1184 = vmatprep.subr.mxu0 0.0
        %1185 = vmatpush2.msra.mxu0 0.0
        %1186 = vmatprep.subr.mxu0 0.0
        %1187 = vmatpush2.msra.mxu0 0.0
        %1188 = vmatprep.subr.mxu0 0.0
        %1189 = vmatpush2.msra.mxu0 0.0
        %1190 = vmatprep.subr.mxu0 0.0
        %1191 = vmatpush2.msra.mxu0 0.0
        %1192 = vmatprep.subr.mxu0 0.0
        %1193 = vmatpush2.msra.mxu0 0.0
        %1194 = vmatprep.subr.mxu0 0.0
        %1195 = vmatpush2.msra.mxu0 0.0
        %1196 = vmatprep.subr.mxu0 0.0
        %1197 = vmatpush2.msra.mxu0 0.0
        %1198 = vmatprep.subr.mxu0 0.0
        %1199 = vmatpush2.msra.mxu0 0.0
        %1200 = vmatprep.mubr.f32.mxu0 0.0
        %1201 = vmatmul.mubr.f32.gmra.mxu0 %v1132
        %v1202 = vpop.f32.mrf.mxu0
        %v1203 = vadd.f32 0.0, %v1202
        %v1204 = vpop.f32.mrf.mxu0
        %1205 = vdwg.mxu0
        %v1206 = vadd.f32 %v1120, %v1203
        %v1207 = vld [vmem:[%s300] sm:$0xff]
        %s1208 = scalar_lea.vmem %s3, 20
        %v1209 = vld [vmem:[%s1208] sm:$0x3]
        %v1211 = vcombine.high %v1207, %v1207
        %1212 = vrot.lane.b32.xlu0 %v1207, 107
        %v1213 = vpop.permute.xlu0 %1212
        %1214 = vrot.lane.b32.xlu0 %v1211, 107
        %v1215 = vpop.permute.xlu0 %1214
        %v1216 = vsel %vm359, %v1213, %v1215
        %v1218 = vsel %vm361, %v1209, 0
        %v1220 = vsel %vm365, %v1216, 0
        %1222 = vmatprep.subr.mxu0 0.0
        %1223 = vmatpush1.msra.mxu0 0.0
        %1224 = vmatprep.subr.mxu0 0.0
        %1225 = vmatpush1.msra.mxu0 0.0
        %1226 = vmatprep.subr.mxu0 0.0
        %1227 = vmatpush1.msra.mxu0 0.0
        %1228 = vmatprep.subr.mxu0 0.0
        %1229 = vmatpush1.msra.mxu0 0.0
        %1230 = vmatprep.subr.mxu0 0.0
        %1231 = vmatpush1.msra.mxu0 0.0
        %1232 = vmatprep.subr.mxu0 0.0
        %1233 = vmatpush1.msra.mxu0 0.0
        %1234 = vmatprep.subr.mxu0 0.0
        %1235 = vmatpush1.msra.mxu0 0.0
        %1236 = vmatprep.subr.mxu0 0.0
        %1237 = vmatpush1.msra.mxu0 0.0
        %1238 = vmatprep.subr.mxu0 0.0
        %1239 = vmatpush1.msra.mxu0 0.0
        %1240 = vmatprep.subr.mxu0 0.0
        %1241 = vmatpush1.msra.mxu0 0.0
        %1242 = vmatprep.subr.mxu0 0.0
        %1243 = vmatpush1.msra.mxu0 0.0
        %1244 = vmatprep.subr.mxu0 0.0
        %1245 = vmatpush1.msra.mxu0 0.0
        %1246 = vmatprep.subr.mxu0 0.0
        %1247 = vmatpush1.msra.mxu0 0.0
        %1248 = vmatprep.subr.mxu0 0.0
        %1249 = vmatpush1.msra.mxu0 0.0
        %1250 = vmatprep.subr.mxu0 0.0
        %1251 = vmatpush1.msra.mxu0 0.0
        %1252 = vmatprep.subr.mxu0 0.0
        %1253 = vmatpush1.msra.mxu0 %v1220
        %1254 = vmatprep.subr.mxu0 0.0
        %1255 = vmatpush2.msra.mxu0 0.0
        %1256 = vmatprep.subr.mxu0 0.0
        %1257 = vmatpush2.msra.mxu0 0.0
        %1258 = vmatprep.subr.mxu0 0.0
        %1259 = vmatpush2.msra.mxu0 0.0
        %1260 = vmatprep.subr.mxu0 0.0
        %1261 = vmatpush2.msra.mxu0 0.0
        %1262 = vmatprep.subr.mxu0 0.0
        %1263 = vmatpush2.msra.mxu0 0.0
        %1264 = vmatprep.subr.mxu0 0.0
        %1265 = vmatpush2.msra.mxu0 0.0
        %1266 = vmatprep.subr.mxu0 0.0
        %1267 = vmatpush2.msra.mxu0 0.0
        %1268 = vmatprep.subr.mxu0 0.0
        %1269 = vmatpush2.msra.mxu0 0.0
        %1270 = vmatprep.subr.mxu0 0.0
        %1271 = vmatpush2.msra.mxu0 0.0
        %1272 = vmatprep.subr.mxu0 0.0
        %1273 = vmatpush2.msra.mxu0 0.0
        %1274 = vmatprep.subr.mxu0 0.0
        %1275 = vmatpush2.msra.mxu0 0.0
        %1276 = vmatprep.subr.mxu0 0.0
        %1277 = vmatpush2.msra.mxu0 0.0
        %1278 = vmatprep.subr.mxu0 0.0
        %1279 = vmatpush2.msra.mxu0 0.0
        %1280 = vmatprep.subr.mxu0 0.0
        %1281 = vmatpush2.msra.mxu0 0.0
        %1282 = vmatprep.subr.mxu0 0.0
        %1283 = vmatpush2.msra.mxu0 0.0
        %1284 = vmatprep.subr.mxu0 0.0
        %1285 = vmatpush2.msra.mxu0 0.0
        %1286 = vmatprep.mubr.f32.mxu0 0.0
        %1287 = vmatmul.mubr.f32.gmra.mxu0 %v1218
        %v1288 = vpop.f32.mrf.mxu0
        %v1289 = vadd.f32 0.0, %v1288
        %v1290 = vpop.f32.mrf.mxu0
        %1291 = vdwg.mxu0
        %v1292 = vadd.f32 %v1206, %v1289
        %v1293 = vld [vmem:[%s300] sm:$0xff]
        %s1294 = scalar_lea.vmem %s3, 22
        %v1295 = vld [vmem:[%s1294] sm:$0x3]
        %v1297 = vcombine.high %v1293, %v1293
        %1298 = vrot.lane.b32.xlu0 %v1293, 108
        %v1299 = vpop.permute.xlu0 %1298
        %1300 = vrot.lane.b32.xlu0 %v1297, 108
        %v1301 = vpop.permute.xlu0 %1300
        %v1302 = vsel %vm528, %v1299, %v1301
        %v1304 = vsel %vm361, %v1295, 0
        %v1306 = vsel %vm365, %v1302, 0
        %1308 = vmatprep.subr.mxu0 0.0
        %1309 = vmatpush1.msra.mxu0 0.0
        %1310 = vmatprep.subr.mxu0 0.0
        %1311 = vmatpush1.msra.mxu0 0.0
        %1312 = vmatprep.subr.mxu0 0.0
        %1313 = vmatpush1.msra.mxu0 0.0
        %1314 = vmatprep.subr.mxu0 0.0
        %1315 = vmatpush1.msra.mxu0 0.0
        %1316 = vmatprep.subr.mxu0 0.0
        %1317 = vmatpush1.msra.mxu0 0.0
        %1318 = vmatprep.subr.mxu0 0.0
        %1319 = vmatpush1.msra.mxu0 0.0
        %1320 = vmatprep.subr.mxu0 0.0
        %1321 = vmatpush1.msra.mxu0 0.0
        %1322 = vmatprep.subr.mxu0 0.0
        %1323 = vmatpush1.msra.mxu0 0.0
        %1324 = vmatprep.subr.mxu0 0.0
        %1325 = vmatpush1.msra.mxu0 0.0
        %1326 = vmatprep.subr.mxu0 0.0
        %1327 = vmatpush1.msra.mxu0 0.0
        %1328 = vmatprep.subr.mxu0 0.0
        %1329 = vmatpush1.msra.mxu0 0.0
        %1330 = vmatprep.subr.mxu0 0.0
        %1331 = vmatpush1.msra.mxu0 0.0
        %1332 = vmatprep.subr.mxu0 0.0
        %1333 = vmatpush1.msra.mxu0 0.0
        %1334 = vmatprep.subr.mxu0 0.0
        %1335 = vmatpush1.msra.mxu0 0.0
        %1336 = vmatprep.subr.mxu0 0.0
        %1337 = vmatpush1.msra.mxu0 0.0
        %1338 = vmatprep.subr.mxu0 0.0
        %1339 = vmatpush1.msra.mxu0 %v1306
        %1340 = vmatprep.subr.mxu0 0.0
        %1341 = vmatpush2.msra.mxu0 0.0
        %1342 = vmatprep.subr.mxu0 0.0
        %1343 = vmatpush2.msra.mxu0 0.0
        %1344 = vmatprep.subr.mxu0 0.0
        %1345 = vmatpush2.msra.mxu0 0.0
        %1346 = vmatprep.subr.mxu0 0.0
        %1347 = vmatpush2.msra.mxu0 0.0
        %1348 = vmatprep.subr.mxu0 0.0
        %1349 = vmatpush2.msra.mxu0 0.0
        %1350 = vmatprep.subr.mxu0 0.0
        %1351 = vmatpush2.msra.mxu0 0.0
        %1352 = vmatprep.subr.mxu0 0.0
        %1353 = vmatpush2.msra.mxu0 0.0
        %1354 = vmatprep.subr.mxu0 0.0
        %1355 = vmatpush2.msra.mxu0 0.0
        %1356 = vmatprep.subr.mxu0 0.0
        %1357 = vmatpush2.msra.mxu0 0.0
        %1358 = vmatprep.subr.mxu0 0.0
        %1359 = vmatpush2.msra.mxu0 0.0
        %1360 = vmatprep.subr.mxu0 0.0
        %1361 = vmatpush2.msra.mxu0 0.0
        %1362 = vmatprep.subr.mxu0 0.0
        %1363 = vmatpush2.msra.mxu0 0.0
        %1364 = vmatprep.subr.mxu0 0.0
        %1365 = vmatpush2.msra.mxu0 0.0
        %1366 = vmatprep.subr.mxu0 0.0
        %1367 = vmatpush2.msra.mxu0 0.0
        %1368 = vmatprep.subr.mxu0 0.0
        %1369 = vmatpush2.msra.mxu0 0.0
        %1370 = vmatprep.subr.mxu0 0.0
        %1371 = vmatpush2.msra.mxu0 0.0
        %1372 = vmatprep.mubr.f32.mxu0 0.0
        %1373 = vmatmul.mubr.f32.gmra.mxu0 %v1304
        %v1374 = vpop.f32.mrf.mxu0
        %v1375 = vadd.f32 0.0, %v1374
        %v1376 = vpop.f32.mrf.mxu0
        %1377 = vdwg.mxu0
        %v1378 = vadd.f32 %v1292, %v1375
        %v1379 = vld [vmem:[%s300] sm:$0xff]
        %s1380 = scalar_lea.vmem %s3, 24
        %v1381 = vld [vmem:[%s1380] sm:$0x3]
        %v1383 = vcombine.high %v1379, %v1379
        %1384 = vrot.lane.b32.xlu0 %v1379, 116
        %v1385 = vpop.permute.xlu0 %1384
        %1386 = vrot.lane.b32.xlu0 %v1383, 116
        %v1387 = vpop.permute.xlu0 %1386
        %v1388 = vsel %vm615, %v1385, %v1387
        %v1390 = vsel %vm361, %v1381, 0
        %v1392 = vsel %vm365, %v1388, 0
        %1394 = vmatprep.subr.mxu0 0.0
        %1395 = vmatpush1.msra.mxu0 0.0
        %1396 = vmatprep.subr.mxu0 0.0
        %1397 = vmatpush1.msra.mxu0 0.0
        %1398 = vmatprep.subr.mxu0 0.0
        %1399 = vmatpush1.msra.mxu0 0.0
        %1400 = vmatprep.subr.mxu0 0.0
        %1401 = vmatpush1.msra.mxu0 0.0
        %1402 = vmatprep.subr.mxu0 0.0
        %1403 = vmatpush1.msra.mxu0 0.0
        %1404 = vmatprep.subr.mxu0 0.0
        %1405 = vmatpush1.msra.mxu0 0.0
        %1406 = vmatprep.subr.mxu0 0.0
        %1407 = vmatpush1.msra.mxu0 0.0
        %1408 = vmatprep.subr.mxu0 0.0
        %1409 = vmatpush1.msra.mxu0 0.0
        %1410 = vmatprep.subr.mxu0 0.0
        %1411 = vmatpush1.msra.mxu0 0.0
        %1412 = vmatprep.subr.mxu0 0.0
        %1413 = vmatpush1.msra.mxu0 0.0
        %1414 = vmatprep.subr.mxu0 0.0
        %1415 = vmatpush1.msra.mxu0 0.0
        %1416 = vmatprep.subr.mxu0 0.0
        %1417 = vmatpush1.msra.mxu0 0.0
        %1418 = vmatprep.subr.mxu0 0.0
        %1419 = vmatpush1.msra.mxu0 0.0
        %1420 = vmatprep.subr.mxu0 0.0
        %1421 = vmatpush1.msra.mxu0 0.0
        %1422 = vmatprep.subr.mxu0 0.0
        %1423 = vmatpush1.msra.mxu0 0.0
        %1424 = vmatprep.subr.mxu0 0.0
        %1425 = vmatpush1.msra.mxu0 %v1392
        %1426 = vmatprep.subr.mxu0 0.0
        %1427 = vmatpush2.msra.mxu0 0.0
        %1428 = vmatprep.subr.mxu0 0.0
        %1429 = vmatpush2.msra.mxu0 0.0
        %1430 = vmatprep.subr.mxu0 0.0
        %1431 = vmatpush2.msra.mxu0 0.0
        %1432 = vmatprep.subr.mxu0 0.0
        %1433 = vmatpush2.msra.mxu0 0.0
        %1434 = vmatprep.subr.mxu0 0.0
        %1435 = vmatpush2.msra.mxu0 0.0
        %1436 = vmatprep.subr.mxu0 0.0
        %1437 = vmatpush2.msra.mxu0 0.0
        %1438 = vmatprep.subr.mxu0 0.0
        %1439 = vmatpush2.msra.mxu0 0.0
        %1440 = vmatprep.subr.mxu0 0.0
        %1441 = vmatpush2.msra.mxu0 0.0
        %1442 = vmatprep.subr.mxu0 0.0
        %1443 = vmatpush2.msra.mxu0 0.0
        %1444 = vmatprep.subr.mxu0 0.0
        %1445 = vmatpush2.msra.mxu0 0.0
        %1446 = vmatprep.subr.mxu0 0.0
        %1447 = vmatpush2.msra.mxu0 0.0
        %1448 = vmatprep.subr.mxu0 0.0
        %1449 = vmatpush2.msra.mxu0 0.0
        %1450 = vmatprep.subr.mxu0 0.0
        %1451 = vmatpush2.msra.mxu0 0.0
        %1452 = vmatprep.subr.mxu0 0.0
        %1453 = vmatpush2.msra.mxu0 0.0
        %1454 = vmatprep.subr.mxu0 0.0
        %1455 = vmatpush2.msra.mxu0 0.0
        %1456 = vmatprep.subr.mxu0 0.0
        %1457 = vmatpush2.msra.mxu0 0.0
        %1458 = vmatprep.mubr.f32.mxu0 0.0
        %1459 = vmatmul.mubr.f32.gmra.mxu0 %v1390
        %v1460 = vpop.f32.mrf.mxu0
        %v1461 = vadd.f32 0.0, %v1460
        %v1462 = vpop.f32.mrf.mxu0
        %1463 = vdwg.mxu0
        %v1464 = vadd.f32 %v1378, %v1461
        %v1465 = vld [vmem:[%s300] sm:$0xff]
        %s1466 = scalar_lea.vmem %s3, 26
        %v1467 = vld [vmem:[%s1466] sm:$0x3]
        %v1469 = vcombine.high %v1465, %v1465
        %1470 = vrot.lane.b32.xlu0 %v1465, 117
        %v1471 = vpop.permute.xlu0 %1470
        %1472 = vrot.lane.b32.xlu0 %v1469, 117
        %v1473 = vpop.permute.xlu0 %1472
        %v1474 = vsel %vm702, %v1471, %v1473
        %v1476 = vsel %vm361, %v1467, 0
        %v1478 = vsel %vm365, %v1474, 0
        %1480 = vmatprep.subr.mxu0 0.0
        %1481 = vmatpush1.msra.mxu0 0.0
        %1482 = vmatprep.subr.mxu0 0.0
        %1483 = vmatpush1.msra.mxu0 0.0
        %1484 = vmatprep.subr.mxu0 0.0
        %1485 = vmatpush1.msra.mxu0 0.0
        %1486 = vmatprep.subr.mxu0 0.0
        %1487 = vmatpush1.msra.mxu0 0.0
        %1488 = vmatprep.subr.mxu0 0.0
        %1489 = vmatpush1.msra.mxu0 0.0
        %1490 = vmatprep.subr.mxu0 0.0
        %1491 = vmatpush1.msra.mxu0 0.0
        %1492 = vmatprep.subr.mxu0 0.0
        %1493 = vmatpush1.msra.mxu0 0.0
        %1494 = vmatprep.subr.mxu0 0.0
        %1495 = vmatpush1.msra.mxu0 0.0
        %1496 = vmatprep.subr.mxu0 0.0
        %1497 = vmatpush1.msra.mxu0 0.0
        %1498 = vmatprep.subr.mxu0 0.0
        %1499 = vmatpush1.msra.mxu0 0.0
        %1500 = vmatprep.subr.mxu0 0.0
        %1501 = vmatpush1.msra.mxu0 0.0
        %1502 = vmatprep.subr.mxu0 0.0
        %1503 = vmatpush1.msra.mxu0 0.0
        %1504 = vmatprep.subr.mxu0 0.0
        %1505 = vmatpush1.msra.mxu0 0.0
        %1506 = vmatprep.subr.mxu0 0.0
        %1507 = vmatpush1.msra.mxu0 0.0
        %1508 = vmatprep.subr.mxu0 0.0
        %1509 = vmatpush1.msra.mxu0 0.0
        %1510 = vmatprep.subr.mxu0 0.0
        %1511 = vmatpush1.msra.mxu0 %v1478
        %1512 = vmatprep.subr.mxu0 0.0
        %1513 = vmatpush2.msra.mxu0 0.0
        %1514 = vmatprep.subr.mxu0 0.0
        %1515 = vmatpush2.msra.mxu0 0.0
        %1516 = vmatprep.subr.mxu0 0.0
        %1517 = vmatpush2.msra.mxu0 0.0
        %1518 = vmatprep.subr.mxu0 0.0
        %1519 = vmatpush2.msra.mxu0 0.0
        %1520 = vmatprep.subr.mxu0 0.0
        %1521 = vmatpush2.msra.mxu0 0.0
        %1522 = vmatprep.subr.mxu0 0.0
        %1523 = vmatpush2.msra.mxu0 0.0
        %1524 = vmatprep.subr.mxu0 0.0
        %1525 = vmatpush2.msra.mxu0 0.0
        %1526 = vmatprep.subr.mxu0 0.0
        %1527 = vmatpush2.msra.mxu0 0.0
        %1528 = vmatprep.subr.mxu0 0.0
        %1529 = vmatpush2.msra.mxu0 0.0
        %1530 = vmatprep.subr.mxu0 0.0
        %1531 = vmatpush2.msra.mxu0 0.0
        %1532 = vmatprep.subr.mxu0 0.0
        %1533 = vmatpush2.msra.mxu0 0.0
        %1534 = vmatprep.subr.mxu0 0.0
        %1535 = vmatpush2.msra.mxu0 0.0
        %1536 = vmatprep.subr.mxu0 0.0
        %1537 = vmatpush2.msra.mxu0 0.0
        %1538 = vmatprep.subr.mxu0 0.0
        %1539 = vmatpush2.msra.mxu0 0.0
        %1540 = vmatprep.subr.mxu0 0.0
        %1541 = vmatpush2.msra.mxu0 0.0
        %1542 = vmatprep.subr.mxu0 0.0
        %1543 = vmatpush2.msra.mxu0 0.0
        %1544 = vmatprep.mubr.f32.mxu0 0.0
        %1545 = vmatmul.mubr.f32.gmra.mxu0 %v1476
        %v1546 = vpop.f32.mrf.mxu0
        %v1547 = vadd.f32 0.0, %v1546
        %v1548 = vpop.f32.mrf.mxu0
        %1549 = vdwg.mxu0
        %v1550 = vadd.f32 %v1464, %v1547
        %v1551 = vld [vmem:[%s300] sm:$0xff]
        %s1552 = scalar_lea.vmem %s3, 28
        %v1553 = vld [vmem:[%s1552] sm:$0x3]
        %v1555 = vcombine.high %v1551, %v1551
        %1556 = vrot.lane.b32.xlu0 %v1551, 118
        %v1557 = vpop.permute.xlu0 %1556
        %1558 = vrot.lane.b32.xlu0 %v1555, 118
        %v1559 = vpop.permute.xlu0 %1558
        %v1560 = vsel %vm789, %v1557, %v1559
        %v1562 = vsel %vm361, %v1553, 0
        %v1564 = vsel %vm365, %v1560, 0
        %1566 = vmatprep.subr.mxu0 0.0
        %1567 = vmatpush1.msra.mxu0 0.0
        %1568 = vmatprep.subr.mxu0 0.0
        %1569 = vmatpush1.msra.mxu0 0.0
        %1570 = vmatprep.subr.mxu0 0.0
        %1571 = vmatpush1.msra.mxu0 0.0
        %1572 = vmatprep.subr.mxu0 0.0
        %1573 = vmatpush1.msra.mxu0 0.0
        %1574 = vmatprep.subr.mxu0 0.0
        %1575 = vmatpush1.msra.mxu0 0.0
        %1576 = vmatprep.subr.mxu0 0.0
        %1577 = vmatpush1.msra.mxu0 0.0
        %1578 = vmatprep.subr.mxu0 0.0
        %1579 = vmatpush1.msra.mxu0 0.0
        %1580 = vmatprep.subr.mxu0 0.0
        %1581 = vmatpush1.msra.mxu0 0.0
        %1582 = vmatprep.subr.mxu0 0.0
        %1583 = vmatpush1.msra.mxu0 0.0
        %1584 = vmatprep.subr.mxu0 0.0
        %1585 = vmatpush1.msra.mxu0 0.0
        %1586 = vmatprep.subr.mxu0 0.0
        %1587 = vmatpush1.msra.mxu0 0.0
        %1588 = vmatprep.subr.mxu0 0.0
        %1589 = vmatpush1.msra.mxu0 0.0
        %1590 = vmatprep.subr.mxu0 0.0
        %1591 = vmatpush1.msra.mxu0 0.0
        %1592 = vmatprep.subr.mxu0 0.0
        %1593 = vmatpush1.msra.mxu0 0.0
        %1594 = vmatprep.subr.mxu0 0.0
        %1595 = vmatpush1.msra.mxu0 0.0
        %1596 = vmatprep.subr.mxu0 0.0
        %1597 = vmatpush1.msra.mxu0 %v1564
        %1598 = vmatprep.subr.mxu0 0.0
        %1599 = vmatpush2.msra.mxu0 0.0
        %1600 = vmatprep.subr.mxu0 0.0
        %1601 = vmatpush2.msra.mxu0 0.0
        %1602 = vmatprep.subr.mxu0 0.0
        %1603 = vmatpush2.msra.mxu0 0.0
        %1604 = vmatprep.subr.mxu0 0.0
        %1605 = vmatpush2.msra.mxu0 0.0
        %1606 = vmatprep.subr.mxu0 0.0
        %1607 = vmatpush2.msra.mxu0 0.0
        %1608 = vmatprep.subr.mxu0 0.0
        %1609 = vmatpush2.msra.mxu0 0.0
        %1610 = vmatprep.subr.mxu0 0.0
        %1611 = vmatpush2.msra.mxu0 0.0
        %1612 = vmatprep.subr.mxu0 0.0
        %1613 = vmatpush2.msra.mxu0 0.0
        %1614 = vmatprep.subr.mxu0 0.0
        %1615 = vmatpush2.msra.mxu0 0.0
        %1616 = vmatprep.subr.mxu0 0.0
        %1617 = vmatpush2.msra.mxu0 0.0
        %1618 = vmatprep.subr.mxu0 0.0
        %1619 = vmatpush2.msra.mxu0 0.0
        %1620 = vmatprep.subr.mxu0 0.0
        %1621 = vmatpush2.msra.mxu0 0.0
        %1622 = vmatprep.subr.mxu0 0.0
        %1623 = vmatpush2.msra.mxu0 0.0
        %1624 = vmatprep.subr.mxu0 0.0
        %1625 = vmatpush2.msra.mxu0 0.0
        %1626 = vmatprep.subr.mxu0 0.0
        %1627 = vmatpush2.msra.mxu0 0.0
        %1628 = vmatprep.subr.mxu0 0.0
        %1629 = vmatpush2.msra.mxu0 0.0
        %1630 = vmatprep.mubr.f32.mxu0 0.0
        %1631 = vmatmul.mubr.f32.gmra.mxu0 %v1562
        %v1632 = vpop.f32.mrf.mxu0
        %v1633 = vadd.f32 0.0, %v1632
        %v1634 = vpop.f32.mrf.mxu0
        %1635 = vdwg.mxu0
        %v1636 = vadd.f32 %v1550, %v1633
        %v1637 = vld [vmem:[%s300] sm:$0xff]
        %s1638 = scalar_lea.vmem %s3, 30
        %v1639 = vld [vmem:[%s1638] sm:$0x3]
        %v1641 = vcombine.high %v1637, %v1637
        %1642 = vrot.lane.b32.xlu0 %v1637, 126
        %v1643 = vpop.permute.xlu0 %1642
        %1644 = vrot.lane.b32.xlu0 %v1641, 126
        %v1645 = vpop.permute.xlu0 %1644
        %v1646 = vsel %vm876, %v1643, %v1645
        %v1648 = vsel %vm361, %v1639, 0
        %v1650 = vsel %vm365, %v1646, 0
        %1652 = vmatprep.subr.mxu0 0.0
        %1653 = vmatpush1.msra.mxu0 0.0
        %1654 = vmatprep.subr.mxu0 0.0
        %1655 = vmatpush1.msra.mxu0 0.0
        %1656 = vmatprep.subr.mxu0 0.0
        %1657 = vmatpush1.msra.mxu0 0.0
        %1658 = vmatprep.subr.mxu0 0.0
        %1659 = vmatpush1.msra.mxu0 0.0
        %1660 = vmatprep.subr.mxu0 0.0
        %1661 = vmatpush1.msra.mxu0 0.0
        %1662 = vmatprep.subr.mxu0 0.0
        %1663 = vmatpush1.msra.mxu0 0.0
        %1664 = vmatprep.subr.mxu0 0.0
        %1665 = vmatpush1.msra.mxu0 0.0
        %1666 = vmatprep.subr.mxu0 0.0
        %1667 = vmatpush1.msra.mxu0 0.0
        %1668 = vmatprep.subr.mxu0 0.0
        %1669 = vmatpush1.msra.mxu0 0.0
        %1670 = vmatprep.subr.mxu0 0.0
        %1671 = vmatpush1.msra.mxu0 0.0
        %1672 = vmatprep.subr.mxu0 0.0
        %1673 = vmatpush1.msra.mxu0 0.0
        %1674 = vmatprep.subr.mxu0 0.0
        %1675 = vmatpush1.msra.mxu0 0.0
        %1676 = vmatprep.subr.mxu0 0.0
        %1677 = vmatpush1.msra.mxu0 0.0
        %1678 = vmatprep.subr.mxu0 0.0
        %1679 = vmatpush1.msra.mxu0 0.0
        %1680 = vmatprep.subr.mxu0 0.0
        %1681 = vmatpush1.msra.mxu0 0.0
        %1682 = vmatprep.subr.mxu0 0.0
        %1683 = vmatpush1.msra.mxu0 %v1650
        %1684 = vmatprep.subr.mxu0 0.0
        %1685 = vmatpush2.msra.mxu0 0.0
        %1686 = vmatprep.subr.mxu0 0.0
        %1687 = vmatpush2.msra.mxu0 0.0
        %1688 = vmatprep.subr.mxu0 0.0
        %1689 = vmatpush2.msra.mxu0 0.0
        %1690 = vmatprep.subr.mxu0 0.0
        %1691 = vmatpush2.msra.mxu0 0.0
        %1692 = vmatprep.subr.mxu0 0.0
        %1693 = vmatpush2.msra.mxu0 0.0
        %1694 = vmatprep.subr.mxu0 0.0
        %1695 = vmatpush2.msra.mxu0 0.0
        %1696 = vmatprep.subr.mxu0 0.0
        %1697 = vmatpush2.msra.mxu0 0.0
        %1698 = vmatprep.subr.mxu0 0.0
        %1699 = vmatpush2.msra.mxu0 0.0
        %1700 = vmatprep.subr.mxu0 0.0
        %1701 = vmatpush2.msra.mxu0 0.0
        %1702 = vmatprep.subr.mxu0 0.0
        %1703 = vmatpush2.msra.mxu0 0.0
        %1704 = vmatprep.subr.mxu0 0.0
        %1705 = vmatpush2.msra.mxu0 0.0
        %1706 = vmatprep.subr.mxu0 0.0
        %1707 = vmatpush2.msra.mxu0 0.0
        %1708 = vmatprep.subr.mxu0 0.0
        %1709 = vmatpush2.msra.mxu0 0.0
        %1710 = vmatprep.subr.mxu0 0.0
        %1711 = vmatpush2.msra.mxu0 0.0
        %1712 = vmatprep.subr.mxu0 0.0
        %1713 = vmatpush2.msra.mxu0 0.0
        %1714 = vmatprep.subr.mxu0 0.0
        %1715 = vmatpush2.msra.mxu0 0.0
        %1716 = vmatprep.mubr.f32.mxu0 0.0
        %1717 = vmatmul.mubr.f32.gmra.mxu0 %v1648
        %v1718 = vpop.f32.mrf.mxu0
        %v1719 = vadd.f32 0.0, %v1718
        %v1720 = vpop.f32.mrf.mxu0
        %1721 = vdwg.mxu0
        %v1722 = vadd.f32 %v1636, %v1719
        %v1723 = vld [vmem:[%s300] sm:$0xff]
        %s1724 = scalar_lea.vmem %s3, 32
        %v1725 = vld [vmem:[%s1724] sm:$0x3]
        %v1727 = vcombine.high %v1723, %v1723
        %1728 = vrot.lane.b32.xlu0 %v1723, 127
        %v1729 = vpop.permute.xlu0 %1728
        %1730 = vrot.lane.b32.xlu0 %v1727, 127
        %v1731 = vpop.permute.xlu0 %1730
        %v1732 = vsel %vm963, %v1729, %v1731
        %v1734 = vsel %vm361, %v1725, 0
        %v1736 = vsel %vm365, %v1732, 0
        %1738 = vmatprep.subr.mxu0 0.0
        %1739 = vmatpush1.msra.mxu0 0.0
        %1740 = vmatprep.subr.mxu0 0.0
        %1741 = vmatpush1.msra.mxu0 0.0
        %1742 = vmatprep.subr.mxu0 0.0
        %1743 = vmatpush1.msra.mxu0 0.0
        %1744 = vmatprep.subr.mxu0 0.0
        %1745 = vmatpush1.msra.mxu0 0.0
        %1746 = vmatprep.subr.mxu0 0.0
        %1747 = vmatpush1.msra.mxu0 0.0
        %1748 = vmatprep.subr.mxu0 0.0
        %1749 = vmatpush1.msra.mxu0 0.0
        %1750 = vmatprep.subr.mxu0 0.0
        %1751 = vmatpush1.msra.mxu0 0.0
        %1752 = vmatprep.subr.mxu0 0.0
        %1753 = vmatpush1.msra.mxu0 0.0
        %1754 = vmatprep.subr.mxu0 0.0
        %1755 = vmatpush1.msra.mxu0 0.0
        %1756 = vmatprep.subr.mxu0 0.0
        %1757 = vmatpush1.msra.mxu0 0.0
        %1758 = vmatprep.subr.mxu0 0.0
        %1759 = vmatpush1.msra.mxu0 0.0
        %1760 = vmatprep.subr.mxu0 0.0
        %1761 = vmatpush1.msra.mxu0 0.0
        %1762 = vmatprep.subr.mxu0 0.0
        %1763 = vmatpush1.msra.mxu0 0.0
        %1764 = vmatprep.subr.mxu0 0.0
        %1765 = vmatpush1.msra.mxu0 0.0
        %1766 = vmatprep.subr.mxu0 0.0
        %1767 = vmatpush1.msra.mxu0 0.0
        %1768 = vmatprep.subr.mxu0 0.0
        %1769 = vmatpush1.msra.mxu0 %v1736
        %1770 = vmatprep.subr.mxu0 0.0
        %1771 = vmatpush2.msra.mxu0 0.0
        %1772 = vmatprep.subr.mxu0 0.0
        %1773 = vmatpush2.msra.mxu0 0.0
        %1774 = vmatprep.subr.mxu0 0.0
        %1775 = vmatpush2.msra.mxu0 0.0
        %1776 = vmatprep.subr.mxu0 0.0
        %1777 = vmatpush2.msra.mxu0 0.0
        %1778 = vmatprep.subr.mxu0 0.0
        %1779 = vmatpush2.msra.mxu0 0.0
        %1780 = vmatprep.subr.mxu0 0.0
        %1781 = vmatpush2.msra.mxu0 0.0
        %1782 = vmatprep.subr.mxu0 0.0
        %1783 = vmatpush2.msra.mxu0 0.0
        %1784 = vmatprep.subr.mxu0 0.0
        %1785 = vmatpush2.msra.mxu0 0.0
        %1786 = vmatprep.subr.mxu0 0.0
        %1787 = vmatpush2.msra.mxu0 0.0
        %1788 = vmatprep.subr.mxu0 0.0
        %1789 = vmatpush2.msra.mxu0 0.0
        %1790 = vmatprep.subr.mxu0 0.0
        %1791 = vmatpush2.msra.mxu0 0.0
        %1792 = vmatprep.subr.mxu0 0.0
        %1793 = vmatpush2.msra.mxu0 0.0
        %1794 = vmatprep.subr.mxu0 0.0
        %1795 = vmatpush2.msra.mxu0 0.0
        %1796 = vmatprep.subr.mxu0 0.0
        %1797 = vmatpush2.msra.mxu0 0.0
        %1798 = vmatprep.subr.mxu0 0.0
        %1799 = vmatpush2.msra.mxu0 0.0
        %1800 = vmatprep.subr.mxu0 0.0
        %1801 = vmatpush2.msra.mxu0 0.0
        %1802 = vmatprep.mubr.f32.mxu0 0.0
        %1803 = vmatmul.mubr.f32.gmra.mxu0 %v1734
        %v1804 = vpop.f32.mrf.mxu0
        %v1805 = vadd.f32 0.0, %v1804
        %v1806 = vpop.f32.mrf.mxu0
        %1807 = vdwg.mxu0
        %v1808 = vadd.f32 %v1722, %v1805
        %v1809 = vld [vmem:[%s300] sm:$0xf]
        %s1810 = scalar_lea.vmem %s3, 34
        %v1811 = vld [vmem:[%s1810] sm:$0x3]
        %v1813 = vsel %vm361, %v1811, 0
        %v1816 = vsel %vm365, %v1809, 0
        %1818 = vmatprep.subr.mxu0 0.0
        %1819 = vmatpush1.msra.mxu0 0.0
        %1820 = vmatprep.subr.mxu0 0.0
        %1821 = vmatpush1.msra.mxu0 0.0
        %1822 = vmatprep.subr.mxu0 0.0
        %1823 = vmatpush1.msra.mxu0 0.0
        %1824 = vmatprep.subr.mxu0 0.0
        %1825 = vmatpush1.msra.mxu0 0.0
        %1826 = vmatprep.subr.mxu0 0.0
        %1827 = vmatpush1.msra.mxu0 0.0
        %1828 = vmatprep.subr.mxu0 0.0
        %1829 = vmatpush1.msra.mxu0 0.0
        %1830 = vmatprep.subr.mxu0 0.0
        %1831 = vmatpush1.msra.mxu0 0.0
        %1832 = vmatprep.subr.mxu0 0.0
        %1833 = vmatpush1.msra.mxu0 0.0
        %1834 = vmatprep.subr.mxu0 0.0
        %1835 = vmatpush1.msra.mxu0 0.0
        %1836 = vmatprep.subr.mxu0 0.0
        %1837 = vmatpush1.msra.mxu0 0.0
        %1838 = vmatprep.subr.mxu0 0.0
        %1839 = vmatpush1.msra.mxu0 0.0
        %1840 = vmatprep.subr.mxu0 0.0
        %1841 = vmatpush1.msra.mxu0 0.0
        %1842 = vmatprep.subr.mxu0 0.0
        %1843 = vmatpush1.msra.mxu0 0.0
        %1844 = vmatprep.subr.mxu0 0.0
        %1845 = vmatpush1.msra.mxu0 0.0
        %1846 = vmatprep.subr.mxu0 0.0
        %1847 = vmatpush1.msra.mxu0 0.0
        %1848 = vmatprep.subr.mxu0 0.0
        %1849 = vmatpush1.msra.mxu0 %v1816
        %1850 = vmatprep.subr.mxu0 0.0
        %1851 = vmatpush2.msra.mxu0 0.0
        %1852 = vmatprep.subr.mxu0 0.0
        %1853 = vmatpush2.msra.mxu0 0.0
        %1854 = vmatprep.subr.mxu0 0.0
        %1855 = vmatpush2.msra.mxu0 0.0
        %1856 = vmatprep.subr.mxu0 0.0
        %1857 = vmatpush2.msra.mxu0 0.0
        %1858 = vmatprep.subr.mxu0 0.0
        %1859 = vmatpush2.msra.mxu0 0.0
        %1860 = vmatprep.subr.mxu0 0.0
        %1861 = vmatpush2.msra.mxu0 0.0
        %1862 = vmatprep.subr.mxu0 0.0
        %1863 = vmatpush2.msra.mxu0 0.0
        %1864 = vmatprep.subr.mxu0 0.0
        %1865 = vmatpush2.msra.mxu0 0.0
        %1866 = vmatprep.subr.mxu0 0.0
        %1867 = vmatpush2.msra.mxu0 0.0
        %1868 = vmatprep.subr.mxu0 0.0
        %1869 = vmatpush2.msra.mxu0 0.0
        %1870 = vmatprep.subr.mxu0 0.0
        %1871 = vmatpush2.msra.mxu0 0.0
        %1872 = vmatprep.subr.mxu0 0.0
        %1873 = vmatpush2.msra.mxu0 0.0
        %1874 = vmatprep.subr.mxu0 0.0
        %1875 = vmatpush2.msra.mxu0 0.0
        %1876 = vmatprep.subr.mxu0 0.0
        %1877 = vmatpush2.msra.mxu0 0.0
        %1878 = vmatprep.subr.mxu0 0.0
        %1879 = vmatpush2.msra.mxu0 0.0
        %1880 = vmatprep.subr.mxu0 0.0
        %1881 = vmatpush2.msra.mxu0 0.0
        %1882 = vmatprep.mubr.f32.mxu0 0.0
        %1883 = vmatmul.mubr.f32.gmra.mxu0 %v1813
        %v1884 = vpop.f32.mrf.mxu0
        %v1885 = vadd.f32 0.0, %v1884
        %v1886 = vpop.f32.mrf.mxu0
        %1887 = vdwg.mxu0
        %v1888 = vadd.f32 %v1808, %v1885
        %v1889 = vld [vmem:[%s309] sm:$0xff]
        %v1890 = vld [vmem:[%s3] sm:$0x3]
        %v1892 = vcombine.high %v1889, %v1889
        %1893 = vrot.lane.b32.xlu0 %v1889, 106
        %v1894 = vpop.permute.xlu0 %1893
        %1895 = vrot.lane.b32.xlu0 %v1892, 106
        %v1896 = vpop.permute.xlu0 %1895
        %v1897 = vsel %vm442, %v1894, %v1896
        %v1899 = vsel %vm361, %v1890, 0
        %v1901 = vsel %vm365, %v1897, 0
        %1903 = vmatprep.subr.mxu0 0.0
        %1904 = vmatpush1.msra.mxu0 0.0
        %1905 = vmatprep.subr.mxu0 0.0
        %1906 = vmatpush1.msra.mxu0 0.0
        %1907 = vmatprep.subr.mxu0 0.0
        %1908 = vmatpush1.msra.mxu0 0.0
        %1909 = vmatprep.subr.mxu0 0.0
        %1910 = vmatpush1.msra.mxu0 0.0
        %1911 = vmatprep.subr.mxu0 0.0
        %1912 = vmatpush1.msra.mxu0 0.0
        %1913 = vmatprep.subr.mxu0 0.0
        %1914 = vmatpush1.msra.mxu0 0.0
        %1915 = vmatprep.subr.mxu0 0.0
        %1916 = vmatpush1.msra.mxu0 0.0
        %1917 = vmatprep.subr.mxu0 0.0
        %1918 = vmatpush1.msra.mxu0 0.0
        %1919 = vmatprep.subr.mxu0 0.0
        %1920 = vmatpush1.msra.mxu0 0.0
        %1921 = vmatprep.subr.mxu0 0.0
        %1922 = vmatpush1.msra.mxu0 0.0
        %1923 = vmatprep.subr.mxu0 0.0
        %1924 = vmatpush1.msra.mxu0 0.0
        %1925 = vmatprep.subr.mxu0 0.0
        %1926 = vmatpush1.msra.mxu0 0.0
        %1927 = vmatprep.subr.mxu0 0.0
        %1928 = vmatpush1.msra.mxu0 0.0
        %1929 = vmatprep.subr.mxu0 0.0
        %1930 = vmatpush1.msra.mxu0 0.0
        %1931 = vmatprep.subr.mxu0 0.0
        %1932 = vmatpush1.msra.mxu0 0.0
        %1933 = vmatprep.subr.mxu0 0.0
        %1934 = vmatpush1.msra.mxu0 %v1901
        %1935 = vmatprep.subr.mxu0 0.0
        %1936 = vmatpush2.msra.mxu0 0.0
        %1937 = vmatprep.subr.mxu0 0.0
        %1938 = vmatpush2.msra.mxu0 0.0
        %1939 = vmatprep.subr.mxu0 0.0
        %1940 = vmatpush2.msra.mxu0 0.0
        %1941 = vmatprep.subr.mxu0 0.0
        %1942 = vmatpush2.msra.mxu0 0.0
        %1943 = vmatprep.subr.mxu0 0.0
        %1944 = vmatpush2.msra.mxu0 0.0
        %1945 = vmatprep.subr.mxu0 0.0
        %1946 = vmatpush2.msra.mxu0 0.0
        %1947 = vmatprep.subr.mxu0 0.0
        %1948 = vmatpush2.msra.mxu0 0.0
        %1949 = vmatprep.subr.mxu0 0.0
        %1950 = vmatpush2.msra.mxu0 0.0
        %1951 = vmatprep.subr.mxu0 0.0
        %1952 = vmatpush2.msra.mxu0 0.0
        %1953 = vmatprep.subr.mxu0 0.0
        %1954 = vmatpush2.msra.mxu0 0.0
        %1955 = vmatprep.subr.mxu0 0.0
        %1956 = vmatpush2.msra.mxu0 0.0
        %1957 = vmatprep.subr.mxu0 0.0
        %1958 = vmatpush2.msra.mxu0 0.0
        %1959 = vmatprep.subr.mxu0 0.0
        %1960 = vmatpush2.msra.mxu0 0.0
        %1961 = vmatprep.subr.mxu0 0.0
        %1962 = vmatpush2.msra.mxu0 0.0
        %1963 = vmatprep.subr.mxu0 0.0
        %1964 = vmatpush2.msra.mxu0 0.0
        %1965 = vmatprep.subr.mxu0 0.0
        %1966 = vmatpush2.msra.mxu0 0.0
        %1967 = vmatprep.mubr.f32.mxu0 0.0
        %1968 = vmatmul.mubr.f32.gmra.mxu0 %v1899
        %v1969 = vpop.f32.mrf.mxu0
        %v1970 = vadd.f32 0.0, %v1969
        %v1971 = vpop.f32.mrf.mxu0
        %1972 = vdwg.mxu0
        %v1973 = vadd.f32 %v1888, %v1970
        %v1974 = vld [vmem:[%s309] sm:$0xff]
        %s1975 = scalar_lea.vmem %s3, 2
        %v1976 = vld [vmem:[%s1975] sm:$0x3]
        %v1978 = vcombine.high %v1974, %v1974
        %1979 = vrot.lane.b32.xlu0 %v1974, 107
        %v1980 = vpop.permute.xlu0 %1979
        %1981 = vrot.lane.b32.xlu0 %v1978, 107
        %v1982 = vpop.permute.xlu0 %1981
        %v1983 = vsel %vm359, %v1980, %v1982
        %v1985 = vsel %vm361, %v1976, 0
        %v1987 = vsel %vm365, %v1983, 0
        %1989 = vmatprep.subr.mxu0 0.0
        %1990 = vmatpush1.msra.mxu0 0.0
        %1991 = vmatprep.subr.mxu0 0.0
        %1992 = vmatpush1.msra.mxu0 0.0
        %1993 = vmatprep.subr.mxu0 0.0
        %1994 = vmatpush1.msra.mxu0 0.0
        %1995 = vmatprep.subr.mxu0 0.0
        %1996 = vmatpush1.msra.mxu0 0.0
        %1997 = vmatprep.subr.mxu0 0.0
        %1998 = vmatpush1.msra.mxu0 0.0
        %1999 = vmatprep.subr.mxu0 0.0
        %2000 = vmatpush1.msra.mxu0 0.0
        %2001 = vmatprep.subr.mxu0 0.0
        %2002 = vmatpush1.msra.mxu0 0.0
        %2003 = vmatprep.subr.mxu0 0.0
        %2004 = vmatpush1.msra.mxu0 0.0
        %2005 = vmatprep.subr.mxu0 0.0
        %2006 = vmatpush1.msra.mxu0 0.0
        %2007 = vmatprep.subr.mxu0 0.0
        %2008 = vmatpush1.msra.mxu0 0.0
        %2009 = vmatprep.subr.mxu0 0.0
        %2010 = vmatpush1.msra.mxu0 0.0
        %2011 = vmatprep.subr.mxu0 0.0
        %2012 = vmatpush1.msra.mxu0 0.0
        %2013 = vmatprep.subr.mxu0 0.0
        %2014 = vmatpush1.msra.mxu0 0.0
        %2015 = vmatprep.subr.mxu0 0.0
        %2016 = vmatpush1.msra.mxu0 0.0
        %2017 = vmatprep.subr.mxu0 0.0
        %2018 = vmatpush1.msra.mxu0 0.0
        %2019 = vmatprep.subr.mxu0 0.0
        %2020 = vmatpush1.msra.mxu0 %v1987
        %2021 = vmatprep.subr.mxu0 0.0
        %2022 = vmatpush2.msra.mxu0 0.0
        %2023 = vmatprep.subr.mxu0 0.0
        %2024 = vmatpush2.msra.mxu0 0.0
        %2025 = vmatprep.subr.mxu0 0.0
        %2026 = vmatpush2.msra.mxu0 0.0
        %2027 = vmatprep.subr.mxu0 0.0
        %2028 = vmatpush2.msra.mxu0 0.0
        %2029 = vmatprep.subr.mxu0 0.0
        %2030 = vmatpush2.msra.mxu0 0.0
        %2031 = vmatprep.subr.mxu0 0.0
        %2032 = vmatpush2.msra.mxu0 0.0
        %2033 = vmatprep.subr.mxu0 0.0
        %2034 = vmatpush2.msra.mxu0 0.0
        %2035 = vmatprep.subr.mxu0 0.0
        %2036 = vmatpush2.msra.mxu0 0.0
        %2037 = vmatprep.subr.mxu0 0.0
        %2038 = vmatpush2.msra.mxu0 0.0
        %2039 = vmatprep.subr.mxu0 0.0
        %2040 = vmatpush2.msra.mxu0 0.0
        %2041 = vmatprep.subr.mxu0 0.0
        %2042 = vmatpush2.msra.mxu0 0.0
        %2043 = vmatprep.subr.mxu0 0.0
        %2044 = vmatpush2.msra.mxu0 0.0
        %2045 = vmatprep.subr.mxu0 0.0
        %2046 = vmatpush2.msra.mxu0 0.0
        %2047 = vmatprep.subr.mxu0 0.0
        %2048 = vmatpush2.msra.mxu0 0.0
        %2049 = vmatprep.subr.mxu0 0.0
        %2050 = vmatpush2.msra.mxu0 0.0
        %2051 = vmatprep.subr.mxu0 0.0
        %2052 = vmatpush2.msra.mxu0 0.0
        %2053 = vmatprep.mubr.f32.mxu0 0.0
        %2054 = vmatmul.mubr.f32.gmra.mxu0 %v1985
        %v2055 = vpop.f32.mrf.mxu0
        %v2056 = vadd.f32 0.0, %v2055
        %v2057 = vpop.f32.mrf.mxu0
        %2058 = vdwg.mxu0
        %v2059 = vadd.f32 %v1973, %v2056
        %v2060 = vld [vmem:[%s309] sm:$0xff]
        %s2061 = scalar_lea.vmem %s3, 4
        %v2062 = vld [vmem:[%s2061] sm:$0x3]
        %v2064 = vcombine.high %v2060, %v2060
        %2065 = vrot.lane.b32.xlu0 %v2060, 108
        %v2066 = vpop.permute.xlu0 %2065
        %2067 = vrot.lane.b32.xlu0 %v2064, 108
        %v2068 = vpop.permute.xlu0 %2067
        %v2069 = vsel %vm528, %v2066, %v2068
        %v2071 = vsel %vm361, %v2062, 0
        %v2073 = vsel %vm365, %v2069, 0
        %2075 = vmatprep.subr.mxu0 0.0
        %2076 = vmatpush1.msra.mxu0 0.0
        %2077 = vmatprep.subr.mxu0 0.0
        %2078 = vmatpush1.msra.mxu0 0.0
        %2079 = vmatprep.subr.mxu0 0.0
        %2080 = vmatpush1.msra.mxu0 0.0
        %2081 = vmatprep.subr.mxu0 0.0
        %2082 = vmatpush1.msra.mxu0 0.0
        %2083 = vmatprep.subr.mxu0 0.0
        %2084 = vmatpush1.msra.mxu0 0.0
        %2085 = vmatprep.subr.mxu0 0.0
        %2086 = vmatpush1.msra.mxu0 0.0
        %2087 = vmatprep.subr.mxu0 0.0
        %2088 = vmatpush1.msra.mxu0 0.0
        %2089 = vmatprep.subr.mxu0 0.0
        %2090 = vmatpush1.msra.mxu0 0.0
        %2091 = vmatprep.subr.mxu0 0.0
        %2092 = vmatpush1.msra.mxu0 0.0
        %2093 = vmatprep.subr.mxu0 0.0
        %2094 = vmatpush1.msra.mxu0 0.0
        %2095 = vmatprep.subr.mxu0 0.0
        %2096 = vmatpush1.msra.mxu0 0.0
        %2097 = vmatprep.subr.mxu0 0.0
        %2098 = vmatpush1.msra.mxu0 0.0
        %2099 = vmatprep.subr.mxu0 0.0
        %2100 = vmatpush1.msra.mxu0 0.0
        %2101 = vmatprep.subr.mxu0 0.0
        %2102 = vmatpush1.msra.mxu0 0.0
        %2103 = vmatprep.subr.mxu0 0.0
        %2104 = vmatpush1.msra.mxu0 0.0
        %2105 = vmatprep.subr.mxu0 0.0
        %2106 = vmatpush1.msra.mxu0 %v2073
        %2107 = vmatprep.subr.mxu0 0.0
        %2108 = vmatpush2.msra.mxu0 0.0
        %2109 = vmatprep.subr.mxu0 0.0
        %2110 = vmatpush2.msra.mxu0 0.0
        %2111 = vmatprep.subr.mxu0 0.0
        %2112 = vmatpush2.msra.mxu0 0.0
        %2113 = vmatprep.subr.mxu0 0.0
        %2114 = vmatpush2.msra.mxu0 0.0
        %2115 = vmatprep.subr.mxu0 0.0
        %2116 = vmatpush2.msra.mxu0 0.0
        %2117 = vmatprep.subr.mxu0 0.0
        %2118 = vmatpush2.msra.mxu0 0.0
        %2119 = vmatprep.subr.mxu0 0.0
        %2120 = vmatpush2.msra.mxu0 0.0
        %2121 = vmatprep.subr.mxu0 0.0
        %2122 = vmatpush2.msra.mxu0 0.0
        %2123 = vmatprep.subr.mxu0 0.0
        %2124 = vmatpush2.msra.mxu0 0.0
        %2125 = vmatprep.subr.mxu0 0.0
        %2126 = vmatpush2.msra.mxu0 0.0
        %2127 = vmatprep.subr.mxu0 0.0
        %2128 = vmatpush2.msra.mxu0 0.0
        %2129 = vmatprep.subr.mxu0 0.0
        %2130 = vmatpush2.msra.mxu0 0.0
        %2131 = vmatprep.subr.mxu0 0.0
        %2132 = vmatpush2.msra.mxu0 0.0
        %2133 = vmatprep.subr.mxu0 0.0
        %2134 = vmatpush2.msra.mxu0 0.0
        %2135 = vmatprep.subr.mxu0 0.0
        %2136 = vmatpush2.msra.mxu0 0.0
        %2137 = vmatprep.subr.mxu0 0.0
        %2138 = vmatpush2.msra.mxu0 0.0
        %2139 = vmatprep.mubr.f32.mxu0 0.0
        %2140 = vmatmul.mubr.f32.gmra.mxu0 %v2071
        %v2141 = vpop.f32.mrf.mxu0
        %v2142 = vadd.f32 0.0, %v2141
        %v2143 = vpop.f32.mrf.mxu0
        %2144 = vdwg.mxu0
        %v2145 = vadd.f32 %v2059, %v2142
        %v2146 = vld [vmem:[%s309] sm:$0xff]
        %s2147 = scalar_lea.vmem %s3, 6
        %v2148 = vld [vmem:[%s2147] sm:$0x3]
        %v2150 = vcombine.high %v2146, %v2146
        %2151 = vrot.lane.b32.xlu0 %v2146, 116
        %v2152 = vpop.permute.xlu0 %2151
        %2153 = vrot.lane.b32.xlu0 %v2150, 116
        %v2154 = vpop.permute.xlu0 %2153
        %v2155 = vsel %vm615, %v2152, %v2154
        %v2157 = vsel %vm361, %v2148, 0
        %v2159 = vsel %vm365, %v2155, 0
        %2161 = vmatprep.subr.mxu0 0.0
        %2162 = vmatpush1.msra.mxu0 0.0
        %2163 = vmatprep.subr.mxu0 0.0
        %2164 = vmatpush1.msra.mxu0 0.0
        %2165 = vmatprep.subr.mxu0 0.0
        %2166 = vmatpush1.msra.mxu0 0.0
        %2167 = vmatprep.subr.mxu0 0.0
        %2168 = vmatpush1.msra.mxu0 0.0
        %2169 = vmatprep.subr.mxu0 0.0
        %2170 = vmatpush1.msra.mxu0 0.0
        %2171 = vmatprep.subr.mxu0 0.0
        %2172 = vmatpush1.msra.mxu0 0.0
        %2173 = vmatprep.subr.mxu0 0.0
        %2174 = vmatpush1.msra.mxu0 0.0
        %2175 = vmatprep.subr.mxu0 0.0
        %2176 = vmatpush1.msra.mxu0 0.0
        %2177 = vmatprep.subr.mxu0 0.0
        %2178 = vmatpush1.msra.mxu0 0.0
        %2179 = vmatprep.subr.mxu0 0.0
        %2180 = vmatpush1.msra.mxu0 0.0
        %2181 = vmatprep.subr.mxu0 0.0
        %2182 = vmatpush1.msra.mxu0 0.0
        %2183 = vmatprep.subr.mxu0 0.0
        %2184 = vmatpush1.msra.mxu0 0.0
        %2185 = vmatprep.subr.mxu0 0.0
        %2186 = vmatpush1.msra.mxu0 0.0
        %2187 = vmatprep.subr.mxu0 0.0
        %2188 = vmatpush1.msra.mxu0 0.0
        %2189 = vmatprep.subr.mxu0 0.0
        %2190 = vmatpush1.msra.mxu0 0.0
        %2191 = vmatprep.subr.mxu0 0.0
        %2192 = vmatpush1.msra.mxu0 %v2159
        %2193 = vmatprep.subr.mxu0 0.0
        %2194 = vmatpush2.msra.mxu0 0.0
        %2195 = vmatprep.subr.mxu0 0.0
        %2196 = vmatpush2.msra.mxu0 0.0
        %2197 = vmatprep.subr.mxu0 0.0
        %2198 = vmatpush2.msra.mxu0 0.0
        %2199 = vmatprep.subr.mxu0 0.0
        %2200 = vmatpush2.msra.mxu0 0.0
        %2201 = vmatprep.subr.mxu0 0.0
        %2202 = vmatpush2.msra.mxu0 0.0
        %2203 = vmatprep.subr.mxu0 0.0
        %2204 = vmatpush2.msra.mxu0 0.0
        %2205 = vmatprep.subr.mxu0 0.0
        %2206 = vmatpush2.msra.mxu0 0.0
        %2207 = vmatprep.subr.mxu0 0.0
        %2208 = vmatpush2.msra.mxu0 0.0
        %2209 = vmatprep.subr.mxu0 0.0
        %2210 = vmatpush2.msra.mxu0 0.0
        %2211 = vmatprep.subr.mxu0 0.0
        %2212 = vmatpush2.msra.mxu0 0.0
        %2213 = vmatprep.subr.mxu0 0.0
        %2214 = vmatpush2.msra.mxu0 0.0
        %2215 = vmatprep.subr.mxu0 0.0
        %2216 = vmatpush2.msra.mxu0 0.0
        %2217 = vmatprep.subr.mxu0 0.0
        %2218 = vmatpush2.msra.mxu0 0.0
        %2219 = vmatprep.subr.mxu0 0.0
        %2220 = vmatpush2.msra.mxu0 0.0
        %2221 = vmatprep.subr.mxu0 0.0
        %2222 = vmatpush2.msra.mxu0 0.0
        %2223 = vmatprep.subr.mxu0 0.0
        %2224 = vmatpush2.msra.mxu0 0.0
        %2225 = vmatprep.mubr.f32.mxu0 0.0
        %2226 = vmatmul.mubr.f32.gmra.mxu0 %v2157
        %v2227 = vpop.f32.mrf.mxu0
        %v2228 = vadd.f32 0.0, %v2227
        %v2229 = vpop.f32.mrf.mxu0
        %2230 = vdwg.mxu0
        %v2231 = vadd.f32 %v2145, %v2228
        %v2232 = vld [vmem:[%s309] sm:$0xff]
        %s2233 = scalar_lea.vmem %s3, 8
        %v2234 = vld [vmem:[%s2233] sm:$0x3]
        %v2236 = vcombine.high %v2232, %v2232
        %2237 = vrot.lane.b32.xlu0 %v2232, 117
        %v2238 = vpop.permute.xlu0 %2237
        %2239 = vrot.lane.b32.xlu0 %v2236, 117
        %v2240 = vpop.permute.xlu0 %2239
        %v2241 = vsel %vm702, %v2238, %v2240
        %v2243 = vsel %vm361, %v2234, 0
        %v2245 = vsel %vm365, %v2241, 0
        %2247 = vmatprep.subr.mxu0 0.0
        %2248 = vmatpush1.msra.mxu0 0.0
        %2249 = vmatprep.subr.mxu0 0.0
        %2250 = vmatpush1.msra.mxu0 0.0
        %2251 = vmatprep.subr.mxu0 0.0
        %2252 = vmatpush1.msra.mxu0 0.0
        %2253 = vmatprep.subr.mxu0 0.0
        %2254 = vmatpush1.msra.mxu0 0.0
        %2255 = vmatprep.subr.mxu0 0.0
        %2256 = vmatpush1.msra.mxu0 0.0
        %2257 = vmatprep.subr.mxu0 0.0
        %2258 = vmatpush1.msra.mxu0 0.0
        %2259 = vmatprep.subr.mxu0 0.0
        %2260 = vmatpush1.msra.mxu0 0.0
        %2261 = vmatprep.subr.mxu0 0.0
        %2262 = vmatpush1.msra.mxu0 0.0
        %2263 = vmatprep.subr.mxu0 0.0
        %2264 = vmatpush1.msra.mxu0 0.0
        %2265 = vmatprep.subr.mxu0 0.0
        %2266 = vmatpush1.msra.mxu0 0.0
        %2267 = vmatprep.subr.mxu0 0.0
        %2268 = vmatpush1.msra.mxu0 0.0
        %2269 = vmatprep.subr.mxu0 0.0
        %2270 = vmatpush1.msra.mxu0 0.0
        %2271 = vmatprep.subr.mxu0 0.0
        %2272 = vmatpush1.msra.mxu0 0.0
        %2273 = vmatprep.subr.mxu0 0.0
        %2274 = vmatpush1.msra.mxu0 0.0
        %2275 = vmatprep.subr.mxu0 0.0
        %2276 = vmatpush1.msra.mxu0 0.0
        %2277 = vmatprep.subr.mxu0 0.0
        %2278 = vmatpush1.msra.mxu0 %v2245
        %2279 = vmatprep.subr.mxu0 0.0
        %2280 = vmatpush2.msra.mxu0 0.0
        %2281 = vmatprep.subr.mxu0 0.0
        %2282 = vmatpush2.msra.mxu0 0.0
        %2283 = vmatprep.subr.mxu0 0.0
        %2284 = vmatpush2.msra.mxu0 0.0
        %2285 = vmatprep.subr.mxu0 0.0
        %2286 = vmatpush2.msra.mxu0 0.0
        %2287 = vmatprep.subr.mxu0 0.0
        %2288 = vmatpush2.msra.mxu0 0.0
        %2289 = vmatprep.subr.mxu0 0.0
        %2290 = vmatpush2.msra.mxu0 0.0
        %2291 = vmatprep.subr.mxu0 0.0
        %2292 = vmatpush2.msra.mxu0 0.0
        %2293 = vmatprep.subr.mxu0 0.0
        %2294 = vmatpush2.msra.mxu0 0.0
        %2295 = vmatprep.subr.mxu0 0.0
        %2296 = vmatpush2.msra.mxu0 0.0
        %2297 = vmatprep.subr.mxu0 0.0
        %2298 = vmatpush2.msra.mxu0 0.0
        %2299 = vmatprep.subr.mxu0 0.0
        %2300 = vmatpush2.msra.mxu0 0.0
        %2301 = vmatprep.subr.mxu0 0.0
        %2302 = vmatpush2.msra.mxu0 0.0
        %2303 = vmatprep.subr.mxu0 0.0
        %2304 = vmatpush2.msra.mxu0 0.0
        %2305 = vmatprep.subr.mxu0 0.0
        %2306 = vmatpush2.msra.mxu0 0.0
        %2307 = vmatprep.subr.mxu0 0.0
        %2308 = vmatpush2.msra.mxu0 0.0
        %2309 = vmatprep.subr.mxu0 0.0
        %2310 = vmatpush2.msra.mxu0 0.0
        %2311 = vmatprep.mubr.f32.mxu0 0.0
        %2312 = vmatmul.mubr.f32.gmra.mxu0 %v2243
        %v2313 = vpop.f32.mrf.mxu0
        %v2314 = vadd.f32 0.0, %v2313
        %v2315 = vpop.f32.mrf.mxu0
        %2316 = vdwg.mxu0
        %v2317 = vadd.f32 %v2231, %v2314
        %v2318 = vld [vmem:[%s309] sm:$0xff]
        %s2319 = scalar_lea.vmem %s3, 10
        %v2320 = vld [vmem:[%s2319] sm:$0x3]
        %v2322 = vcombine.high %v2318, %v2318
        %2323 = vrot.lane.b32.xlu0 %v2318, 118
        %v2324 = vpop.permute.xlu0 %2323
        %2325 = vrot.lane.b32.xlu0 %v2322, 118
        %v2326 = vpop.permute.xlu0 %2325
        %v2327 = vsel %vm789, %v2324, %v2326
        %v2329 = vsel %vm361, %v2320, 0
        %v2331 = vsel %vm365, %v2327, 0
        %2333 = vmatprep.subr.mxu0 0.0
        %2334 = vmatpush1.msra.mxu0 0.0
        %2335 = vmatprep.subr.mxu0 0.0
        %2336 = vmatpush1.msra.mxu0 0.0
        %2337 = vmatprep.subr.mxu0 0.0
        %2338 = vmatpush1.msra.mxu0 0.0
        %2339 = vmatprep.subr.mxu0 0.0
        %2340 = vmatpush1.msra.mxu0 0.0
        %2341 = vmatprep.subr.mxu0 0.0
        %2342 = vmatpush1.msra.mxu0 0.0
        %2343 = vmatprep.subr.mxu0 0.0
        %2344 = vmatpush1.msra.mxu0 0.0
        %2345 = vmatprep.subr.mxu0 0.0
        %2346 = vmatpush1.msra.mxu0 0.0
        %2347 = vmatprep.subr.mxu0 0.0
        %2348 = vmatpush1.msra.mxu0 0.0
        %2349 = vmatprep.subr.mxu0 0.0
        %2350 = vmatpush1.msra.mxu0 0.0
        %2351 = vmatprep.subr.mxu0 0.0
        %2352 = vmatpush1.msra.mxu0 0.0
        %2353 = vmatprep.subr.mxu0 0.0
        %2354 = vmatpush1.msra.mxu0 0.0
        %2355 = vmatprep.subr.mxu0 0.0
        %2356 = vmatpush1.msra.mxu0 0.0
        %2357 = vmatprep.subr.mxu0 0.0
        %2358 = vmatpush1.msra.mxu0 0.0
        %2359 = vmatprep.subr.mxu0 0.0
        %2360 = vmatpush1.msra.mxu0 0.0
        %2361 = vmatprep.subr.mxu0 0.0
        %2362 = vmatpush1.msra.mxu0 0.0
        %2363 = vmatprep.subr.mxu0 0.0
        %2364 = vmatpush1.msra.mxu0 %v2331
        %2365 = vmatprep.subr.mxu0 0.0
        %2366 = vmatpush2.msra.mxu0 0.0
        %2367 = vmatprep.subr.mxu0 0.0
        %2368 = vmatpush2.msra.mxu0 0.0
        %2369 = vmatprep.subr.mxu0 0.0
        %2370 = vmatpush2.msra.mxu0 0.0
        %2371 = vmatprep.subr.mxu0 0.0
        %2372 = vmatpush2.msra.mxu0 0.0
        %2373 = vmatprep.subr.mxu0 0.0
        %2374 = vmatpush2.msra.mxu0 0.0
        %2375 = vmatprep.subr.mxu0 0.0
        %2376 = vmatpush2.msra.mxu0 0.0
        %2377 = vmatprep.subr.mxu0 0.0
        %2378 = vmatpush2.msra.mxu0 0.0
        %2379 = vmatprep.subr.mxu0 0.0
        %2380 = vmatpush2.msra.mxu0 0.0
        %2381 = vmatprep.subr.mxu0 0.0
        %2382 = vmatpush2.msra.mxu0 0.0
        %2383 = vmatprep.subr.mxu0 0.0
        %2384 = vmatpush2.msra.mxu0 0.0
        %2385 = vmatprep.subr.mxu0 0.0
        %2386 = vmatpush2.msra.mxu0 0.0
        %2387 = vmatprep.subr.mxu0 0.0
        %2388 = vmatpush2.msra.mxu0 0.0
        %2389 = vmatprep.subr.mxu0 0.0
        %2390 = vmatpush2.msra.mxu0 0.0
        %2391 = vmatprep.subr.mxu0 0.0
        %2392 = vmatpush2.msra.mxu0 0.0
        %2393 = vmatprep.subr.mxu0 0.0
        %2394 = vmatpush2.msra.mxu0 0.0
        %2395 = vmatprep.subr.mxu0 0.0
        %2396 = vmatpush2.msra.mxu0 0.0
        %2397 = vmatprep.mubr.f32.mxu0 0.0
        %2398 = vmatmul.mubr.f32.gmra.mxu0 %v2329
        %v2399 = vpop.f32.mrf.mxu0
        %v2400 = vadd.f32 0.0, %v2399
        %v2401 = vpop.f32.mrf.mxu0
        %2402 = vdwg.mxu0
        %v2403 = vadd.f32 %v2317, %v2400
        %v2404 = vld [vmem:[%s309] sm:$0xff]
        %s2405 = scalar_lea.vmem %s3, 12
        %v2406 = vld [vmem:[%s2405] sm:$0x3]
        %v2408 = vcombine.high %v2404, %v2404
        %2409 = vrot.lane.b32.xlu0 %v2404, 126
        %v2410 = vpop.permute.xlu0 %2409
        %2411 = vrot.lane.b32.xlu0 %v2408, 126
        %v2412 = vpop.permute.xlu0 %2411
        %v2413 = vsel %vm876, %v2410, %v2412
        %v2415 = vsel %vm361, %v2406, 0
        %v2417 = vsel %vm365, %v2413, 0
        %2419 = vmatprep.subr.mxu0 0.0
        %2420 = vmatpush1.msra.mxu0 0.0
        %2421 = vmatprep.subr.mxu0 0.0
        %2422 = vmatpush1.msra.mxu0 0.0
        %2423 = vmatprep.subr.mxu0 0.0
        %2424 = vmatpush1.msra.mxu0 0.0
        %2425 = vmatprep.subr.mxu0 0.0
        %2426 = vmatpush1.msra.mxu0 0.0
        %2427 = vmatprep.subr.mxu0 0.0
        %2428 = vmatpush1.msra.mxu0 0.0
        %2429 = vmatprep.subr.mxu0 0.0
        %2430 = vmatpush1.msra.mxu0 0.0
        %2431 = vmatprep.subr.mxu0 0.0
        %2432 = vmatpush1.msra.mxu0 0.0
        %2433 = vmatprep.subr.mxu0 0.0
        %2434 = vmatpush1.msra.mxu0 0.0
        %2435 = vmatprep.subr.mxu0 0.0
        %2436 = vmatpush1.msra.mxu0 0.0
        %2437 = vmatprep.subr.mxu0 0.0
        %2438 = vmatpush1.msra.mxu0 0.0
        %2439 = vmatprep.subr.mxu0 0.0
        %2440 = vmatpush1.msra.mxu0 0.0
        %2441 = vmatprep.subr.mxu0 0.0
        %2442 = vmatpush1.msra.mxu0 0.0
        %2443 = vmatprep.subr.mxu0 0.0
        %2444 = vmatpush1.msra.mxu0 0.0
        %2445 = vmatprep.subr.mxu0 0.0
        %2446 = vmatpush1.msra.mxu0 0.0
        %2447 = vmatprep.subr.mxu0 0.0
        %2448 = vmatpush1.msra.mxu0 0.0
        %2449 = vmatprep.subr.mxu0 0.0
        %2450 = vmatpush1.msra.mxu0 %v2417
        %2451 = vmatprep.subr.mxu0 0.0
        %2452 = vmatpush2.msra.mxu0 0.0
        %2453 = vmatprep.subr.mxu0 0.0
        %2454 = vmatpush2.msra.mxu0 0.0
        %2455 = vmatprep.subr.mxu0 0.0
        %2456 = vmatpush2.msra.mxu0 0.0
        %2457 = vmatprep.subr.mxu0 0.0
        %2458 = vmatpush2.msra.mxu0 0.0
        %2459 = vmatprep.subr.mxu0 0.0
        %2460 = vmatpush2.msra.mxu0 0.0
        %2461 = vmatprep.subr.mxu0 0.0
        %2462 = vmatpush2.msra.mxu0 0.0
        %2463 = vmatprep.subr.mxu0 0.0
        %2464 = vmatpush2.msra.mxu0 0.0
        %2465 = vmatprep.subr.mxu0 0.0
        %2466 = vmatpush2.msra.mxu0 0.0
        %2467 = vmatprep.subr.mxu0 0.0
        %2468 = vmatpush2.msra.mxu0 0.0
        %2469 = vmatprep.subr.mxu0 0.0
        %2470 = vmatpush2.msra.mxu0 0.0
        %2471 = vmatprep.subr.mxu0 0.0
        %2472 = vmatpush2.msra.mxu0 0.0
        %2473 = vmatprep.subr.mxu0 0.0
        %2474 = vmatpush2.msra.mxu0 0.0
        %2475 = vmatprep.subr.mxu0 0.0
        %2476 = vmatpush2.msra.mxu0 0.0
        %2477 = vmatprep.subr.mxu0 0.0
        %2478 = vmatpush2.msra.mxu0 0.0
        %2479 = vmatprep.subr.mxu0 0.0
        %2480 = vmatpush2.msra.mxu0 0.0
        %2481 = vmatprep.subr.mxu0 0.0
        %2482 = vmatpush2.msra.mxu0 0.0
        %2483 = vmatprep.mubr.f32.mxu0 0.0
        %2484 = vmatmul.mubr.f32.gmra.mxu0 %v2415
        %v2485 = vpop.f32.mrf.mxu0
        %v2486 = vadd.f32 0.0, %v2485
        %v2487 = vpop.f32.mrf.mxu0
        %2488 = vdwg.mxu0
        %v2489 = vadd.f32 %v2403, %v2486
        %v2490 = vld [vmem:[%s309] sm:$0xff]
        %s2491 = scalar_lea.vmem %s3, 14
        %v2492 = vld [vmem:[%s2491] sm:$0x3]
        %v2494 = vcombine.high %v2490, %v2490
        %2495 = vrot.lane.b32.xlu0 %v2490, 127
        %v2496 = vpop.permute.xlu0 %2495
        %2497 = vrot.lane.b32.xlu0 %v2494, 127
        %v2498 = vpop.permute.xlu0 %2497
        %v2499 = vsel %vm963, %v2496, %v2498
        %v2501 = vsel %vm361, %v2492, 0
        %v2503 = vsel %vm365, %v2499, 0
        %2505 = vmatprep.subr.mxu0 0.0
        %2506 = vmatpush1.msra.mxu0 0.0
        %2507 = vmatprep.subr.mxu0 0.0
        %2508 = vmatpush1.msra.mxu0 0.0
        %2509 = vmatprep.subr.mxu0 0.0
        %2510 = vmatpush1.msra.mxu0 0.0
        %2511 = vmatprep.subr.mxu0 0.0
        %2512 = vmatpush1.msra.mxu0 0.0
        %2513 = vmatprep.subr.mxu0 0.0
        %2514 = vmatpush1.msra.mxu0 0.0
        %2515 = vmatprep.subr.mxu0 0.0
        %2516 = vmatpush1.msra.mxu0 0.0
        %2517 = vmatprep.subr.mxu0 0.0
        %2518 = vmatpush1.msra.mxu0 0.0
        %2519 = vmatprep.subr.mxu0 0.0
        %2520 = vmatpush1.msra.mxu0 0.0
        %2521 = vmatprep.subr.mxu0 0.0
        %2522 = vmatpush1.msra.mxu0 0.0
        %2523 = vmatprep.subr.mxu0 0.0
        %2524 = vmatpush1.msra.mxu0 0.0
        %2525 = vmatprep.subr.mxu0 0.0
        %2526 = vmatpush1.msra.mxu0 0.0
        %2527 = vmatprep.subr.mxu0 0.0
        %2528 = vmatpush1.msra.mxu0 0.0
        %2529 = vmatprep.subr.mxu0 0.0
        %2530 = vmatpush1.msra.mxu0 0.0
        %2531 = vmatprep.subr.mxu0 0.0
        %2532 = vmatpush1.msra.mxu0 0.0
        %2533 = vmatprep.subr.mxu0 0.0
        %2534 = vmatpush1.msra.mxu0 0.0
        %2535 = vmatprep.subr.mxu0 0.0
        %2536 = vmatpush1.msra.mxu0 %v2503
        %2537 = vmatprep.subr.mxu0 0.0
        %2538 = vmatpush2.msra.mxu0 0.0
        %2539 = vmatprep.subr.mxu0 0.0
        %2540 = vmatpush2.msra.mxu0 0.0
        %2541 = vmatprep.subr.mxu0 0.0
        %2542 = vmatpush2.msra.mxu0 0.0
        %2543 = vmatprep.subr.mxu0 0.0
        %2544 = vmatpush2.msra.mxu0 0.0
        %2545 = vmatprep.subr.mxu0 0.0
        %2546 = vmatpush2.msra.mxu0 0.0
        %2547 = vmatprep.subr.mxu0 0.0
        %2548 = vmatpush2.msra.mxu0 0.0
        %2549 = vmatprep.subr.mxu0 0.0
        %2550 = vmatpush2.msra.mxu0 0.0
        %2551 = vmatprep.subr.mxu0 0.0
        %2552 = vmatpush2.msra.mxu0 0.0
        %2553 = vmatprep.subr.mxu0 0.0
        %2554 = vmatpush2.msra.mxu0 0.0
        %2555 = vmatprep.subr.mxu0 0.0
        %2556 = vmatpush2.msra.mxu0 0.0
        %2557 = vmatprep.subr.mxu0 0.0
        %2558 = vmatpush2.msra.mxu0 0.0
        %2559 = vmatprep.subr.mxu0 0.0
        %2560 = vmatpush2.msra.mxu0 0.0
        %2561 = vmatprep.subr.mxu0 0.0
        %2562 = vmatpush2.msra.mxu0 0.0
        %2563 = vmatprep.subr.mxu0 0.0
        %2564 = vmatpush2.msra.mxu0 0.0
        %2565 = vmatprep.subr.mxu0 0.0
        %2566 = vmatpush2.msra.mxu0 0.0
        %2567 = vmatprep.subr.mxu0 0.0
        %2568 = vmatpush2.msra.mxu0 0.0
        %2569 = vmatprep.mubr.f32.mxu0 0.0
        %2570 = vmatmul.mubr.f32.gmra.mxu0 %v2501
        %v2571 = vpop.f32.mrf.mxu0
        %v2572 = vadd.f32 0.0, %v2571
        %v2573 = vpop.f32.mrf.mxu0
        %2574 = vdwg.mxu0
        %v2575 = vadd.f32 %v2489, %v2572
        %v2576 = vld [vmem:[%s309] sm:$0xf]
        %s2577 = scalar_lea.vmem %s3, 16
        %v2578 = vld [vmem:[%s2577] sm:$0x3]
        %v2580 = vsel %vm361, %v2578, 0
        %v2583 = vsel %vm365, %v2576, 0
        %2585 = vmatprep.subr.mxu0 0.0
        %2586 = vmatpush1.msra.mxu0 0.0
        %2587 = vmatprep.subr.mxu0 0.0
        %2588 = vmatpush1.msra.mxu0 0.0
        %2589 = vmatprep.subr.mxu0 0.0
        %2590 = vmatpush1.msra.mxu0 0.0
        %2591 = vmatprep.subr.mxu0 0.0
        %2592 = vmatpush1.msra.mxu0 0.0
        %2593 = vmatprep.subr.mxu0 0.0
        %2594 = vmatpush1.msra.mxu0 0.0
        %2595 = vmatprep.subr.mxu0 0.0
        %2596 = vmatpush1.msra.mxu0 0.0
        %2597 = vmatprep.subr.mxu0 0.0
        %2598 = vmatpush1.msra.mxu0 0.0
        %2599 = vmatprep.subr.mxu0 0.0
        %2600 = vmatpush1.msra.mxu0 0.0
        %2601 = vmatprep.subr.mxu0 0.0
        %2602 = vmatpush1.msra.mxu0 0.0
        %2603 = vmatprep.subr.mxu0 0.0
        %2604 = vmatpush1.msra.mxu0 0.0
        %2605 = vmatprep.subr.mxu0 0.0
        %2606 = vmatpush1.msra.mxu0 0.0
        %2607 = vmatprep.subr.mxu0 0.0
        %2608 = vmatpush1.msra.mxu0 0.0
        %2609 = vmatprep.subr.mxu0 0.0
        %2610 = vmatpush1.msra.mxu0 0.0
        %2611 = vmatprep.subr.mxu0 0.0
        %2612 = vmatpush1.msra.mxu0 0.0
        %2613 = vmatprep.subr.mxu0 0.0
        %2614 = vmatpush1.msra.mxu0 0.0
        %2615 = vmatprep.subr.mxu0 0.0
        %2616 = vmatpush1.msra.mxu0 %v2583
        %2617 = vmatprep.subr.mxu0 0.0
        %2618 = vmatpush2.msra.mxu0 0.0
        %2619 = vmatprep.subr.mxu0 0.0
        %2620 = vmatpush2.msra.mxu0 0.0
        %2621 = vmatprep.subr.mxu0 0.0
        %2622 = vmatpush2.msra.mxu0 0.0
        %2623 = vmatprep.subr.mxu0 0.0
        %2624 = vmatpush2.msra.mxu0 0.0
        %2625 = vmatprep.subr.mxu0 0.0
        %2626 = vmatpush2.msra.mxu0 0.0
        %2627 = vmatprep.subr.mxu0 0.0
        %2628 = vmatpush2.msra.mxu0 0.0
        %2629 = vmatprep.subr.mxu0 0.0
        %2630 = vmatpush2.msra.mxu0 0.0
        %2631 = vmatprep.subr.mxu0 0.0
        %2632 = vmatpush2.msra.mxu0 0.0
        %2633 = vmatprep.subr.mxu0 0.0
        %2634 = vmatpush2.msra.mxu0 0.0
        %2635 = vmatprep.subr.mxu0 0.0
        %2636 = vmatpush2.msra.mxu0 0.0
        %2637 = vmatprep.subr.mxu0 0.0
        %2638 = vmatpush2.msra.mxu0 0.0
        %2639 = vmatprep.subr.mxu0 0.0
        %2640 = vmatpush2.msra.mxu0 0.0
        %2641 = vmatprep.subr.mxu0 0.0
        %2642 = vmatpush2.msra.mxu0 0.0
        %2643 = vmatprep.subr.mxu0 0.0
        %2644 = vmatpush2.msra.mxu0 0.0
        %2645 = vmatprep.subr.mxu0 0.0
        %2646 = vmatpush2.msra.mxu0 0.0
        %2647 = vmatprep.subr.mxu0 0.0
        %2648 = vmatpush2.msra.mxu0 0.0
        %2649 = vmatprep.mubr.f32.mxu0 0.0
        %2650 = vmatmul.mubr.f32.gmra.mxu0 %v2580
        %v2651 = vpop.f32.mrf.mxu0
        %v2652 = vadd.f32 0.0, %v2651
        %v2653 = vpop.f32.mrf.mxu0
        %2654 = vdwg.mxu0
        %v2655 = vadd.f32 %v2575, %v2652
        %v2656 = vld [vmem:[%s4] sm:$0x3]
        %2658 = vset.pattern.permute.xlu0 0
        %2659 = vperm.xlu0 %2658, %v2656
        %v2660 = vpop.permute.xlu0 %2659
        %v2662 = vadd.f32 %v2655, %v2660
        %v2663 = vmax.f32 %v2662, 0.0
        %2664 = vst [vmem:[%s345] sm:$0x3] %v2663
        %s2665 = sand.u32 %s177, 1
        %s2666 = scalar_lea.sflag [#allocation4], %s2665
        %s2667 = sand.u32 %s177, 1
        %s2668 = smul.addr %s2667, 2
        %s2669 = scalar_lea.vmem [#allocation8], %s2668
        // Predicated region
        $region53: #{tpu_custom_call.1} parent=39 // pred_check
          %p2670 = pneg %p187
        $region54: #{tpu_custom_call.1} parent=39 // pred_check_branch
          %2672 = sbr.rel (%p2670) target = $region56
        $region55: #{tpu_custom_call.1} parent=39 // pred_region
          %s2674 = ssub.s32 32, 32
          %2675 = vsyncadd %s2666, %s2674
          %s2676 = smul.addr %s29, 10
          %s2677 = sadd.s32 %s30, %s2676
          %s2678 = smul.addr %s2677, 32
          %s2679 = scalar_lea.hbm %s5, %s2678
          %s2681 = sshll.u32 %s2669, 4
          %s2682 = int_to_ptr.vmem [resolvable:$true] %s2681
          %2684 = dma.vmem_to_hbm [thread:$0]  %s2682, 32, %s2679, %s2666
        $region56: #{tpu_custom_call.1} parent=39 // pred_fallthru
          _
      $region40: #{tpu_custom_call.1} parent=5 // pred_fallthru
        _
      %p2685 = scmp.le.s32.totalorder 2, %s20
      // Predicated region
      $region57: #{tpu_custom_call.1} parent=5 // pred_check
        %p2686 = pneg %p2685
      $region58: #{tpu_custom_call.1} parent=5 // pred_check_branch
        %2688 = sbr.rel (%p2686) target = $region60
      $region59: #{tpu_custom_call.1} parent=5 // pred_region
        %s2689 = ssub.s32 %s20, 2
        // Predicated region
        $region61: #{tpu_custom_call.1} parent=59 // pred_check
          %p2690 = pneg %p193
        $region62: #{tpu_custom_call.1} parent=59 // pred_check_branch
          %2692 = sbr.rel (%p2690) target = $region64
        $region63: #{tpu_custom_call.1} parent=59 // pred_region
          %s2693 = sand.u32 %s178, 1
          %s2694 = scalar_lea.sflag [#allocation4], %s2693
          %s2695 = sand.u32 %s178, 1
          %s2696 = smul.addr %s2695, 2
          %s2697 = scalar_lea.vmem [#allocation8], %s2696
          %2698 = dma.done %s2694, 32
        $region64: #{tpu_custom_call.1} parent=59 // pred_fallthru
          _
      $region60: #{tpu_custom_call.1} parent=5 // pred_fallthru
        _
    $region6: #{tpu_custom_call.1} parent=1 // loop_footer
      %s24 = sadd.s32 1, %s20
    $region7: #{tpu_custom_call.1} parent=1 // loop_footer_branch
      %19 = sbr.rel target = $region3
    $region8: #{tpu_custom_call.1} parent=1 // loop_exit
      _
    %2699 = vsyncpa [#allocation3], 1
    %s2700 = scalar_lea.sflag [#allocation3], 1
    %2701 = vsyncpa %s2700, 1
    %2702 = vsyncpa [#allocation6], 1
    %s2703 = scalar_lea.sflag [#allocation6], 1
    %2704 = vsyncpa %s2703, 1
    %2705 = vsyncpa [#allocation4], 1
    %s2706 = scalar_lea.sflag [#allocation4], 1
    %2707 = vsyncpa %s2706, 1

</llo_original>
